<compile_context>
chip_gen: v7x
topology: tpu7x:2x2x1
jax: 0.10.0
libtpu: 0.0.40
codegen_flags: <defaults>
</compile_context>

<pallas_src>
import jax
import jax.numpy as jnp
from jax import lax
from jax.experimental import pallas as pl
from jax.experimental.pallas import tpu as pltpu


def _round_up(x, m):
    return ((x + m - 1) // m) * m


def _reorder_ifgo_to_ifog(w, axis=0):
    """PyTorch gate order [i, f, g, o] -> kernel order [i, f, o, g]."""
    i, f, g, o = jnp.split(w, 4, axis=axis)
    return jnp.concatenate([i, f, o, g], axis=axis)


# --------------------------------------------------------------------------
# Kernel
# --------------------------------------------------------------------------
def lstm_classifier_kernel(xf_ref, xb_ref, len_ref,
                           wih_f_ref, whh_f_ref, b_f_ref,
                           wih_b_ref, whh_b_ref, b_b_ref,
                           wfc_ref, bfc_ref,
                           out_ref,
                           h_f_ref, c_f_ref, h_b_ref, c_b_ref,
                           gxf_ref, gxb_ref):
    Tt, Bt, E = xf_ref.shape
    H = whh_f_ref.shape[0]
    t_idx = pl.program_id(1)
    nT = pl.num_programs(1)
    T_total = nT * Tt

    # (Re)initialize the recurrent state at the start of each batch tile's
    # time sweep.
    @pl.when(t_idx == 0)
    def _():
        h_f_ref[...] = jnp.zeros_like(h_f_ref)
        c_f_ref[...] = jnp.zeros_like(c_f_ref)
        h_b_ref[...] = jnp.zeros_like(h_b_ref)
        c_b_ref[...] = jnp.zeros_like(c_b_ref)

    # Hoisted input projection: one big matmul per direction per tile,
    # biases folded in once (not per timestep).
    xf = xf_ref[...].reshape(Tt * Bt, E)
    xb = xb_ref[...].reshape(Tt * Bt, E)
    gxf_ref[...] = (jnp.dot(xf, wih_f_ref[...], preferred_element_type=jnp.float32)
                    + b_f_ref[...]).reshape(Tt, Bt, 4 * H)
    gxb_ref[...] = (jnp.dot(xb, wih_b_ref[...], preferred_element_type=jnp.float32)
                    + b_b_ref[...]).reshape(Tt, Bt, 4 * H)

    lengths = len_ref[...]                       # (Bt, 1) int32
    whh_f = whh_f_ref[...]
    whh_b = whh_b_ref[...]

    def cell(g_pre, h, c, whh):
        # Gate layout reordered offline to [i | f | o | g]: one wide sigmoid
        # over the first 3H lanes, one tanh over the last H lanes.
        gates = g_pre + jnp.dot(h, whh, preferred_element_type=jnp.float32)
        s = jax.nn.sigmoid(gates[:, :3 * H])
        g = jnp.tanh(gates[:, 3 * H:])
        i_g = s[:, :H]
        f_g = s[:, H:2 * H]
        o_g = s[:, 2 * H:]
        c_new = f_g * c + i_g * g
        h_new = o_g * jnp.tanh(c_new)
        return h_new, c_new

    # Fused forward/backward recurrence: two independent serial chains in one
    # loop body; packed-sequence semantics via per-row length masking.
    def body(i, carry):
        h_f, c_f, h_b, c_b = carry
        t_f = t_idx * Tt + i                     # global forward timestep
        t_b = T_total - 1 - t_f                  # global backward timestep

        hf_new, cf_new = cell(gxf_ref[i], h_f, c_f, whh_f)
        hb_new, cb_new = cell(gxb_ref[Tt - 1 - i], h_b, c_b, whh_b)

        valid_f = t_f < lengths                  # (Bt, 1) bool
        valid_b = t_b < lengths
        h_f = jnp.where(valid_f, hf_new, h_f)
        c_f = jnp.where(valid_f, cf_new, c_f)
        h_b = jnp.where(valid_b, hb_new, h_b)
        c_b = jnp.where(valid_b, cb_new, c_b)
        return h_f, c_f, h_b, c_b

    carry0 = (h_f_ref[...], c_f_ref[...], h_b_ref[...], c_b_ref[...])
    h_f, c_f, h_b, c_b = lax.fori_loop(0, Tt, body, carry0, unroll=True)
    h_f_ref[...], c_f_ref[...] = h_f, c_f
    h_b_ref[...], c_b_ref[...] = h_b, c_b

    # Classifier head on the final hidden states (lane-dense padded output).
    # wfc is split by direction, avoiding a lane-concat of h_f || h_b.
    @pl.when(t_idx == nT - 1)
    def _():
        out_ref[...] = (
            jnp.dot(h_f, wfc_ref[:H, :], preferred_element_type=jnp.float32)
            + jnp.dot(h_b, wfc_ref[H:, :], preferred_element_type=jnp.float32)
            + bfc_ref[...])


# --------------------------------------------------------------------------
# Parameter preparation (offline reorder / transpose / pad)
# --------------------------------------------------------------------------
def prepare_kernel_params(params, e_pad, c_pad):
    H = params["w_hh_f"].shape[1]
    E = params["w_ih_f"].shape[1]
    C = params["w_fc"].shape[0]

    def prep_dir(w_ih, w_hh, b_ih, b_hh):
        wih = _reorder_ifgo_to_ifog(w_ih, axis=0).T          # (E, 4H)
        wih = jnp.pad(wih, ((0, e_pad - E), (0, 0)))         # zero-pad E rows
        whh = _reorder_ifgo_to_ifog(w_hh, axis=0).T          # (H, 4H)
        b = _reorder_ifgo_to_ifog(b_ih + b_hh, axis=0).reshape(1, 4 * H)
        return wih, whh, b

    wih_f, whh_f, b_f = prep_dir(params["w_ih_f"], params["w_hh_f"],
                                 params["b_ih_f"], params["b_hh_f"])
    wih_b, whh_b, b_b = prep_dir(params["w_ih_b"], params["w_hh_b"],
                                 params["b_ih_b"], params["b_hh_b"])
    wfc = jnp.pad(params["w_fc"].T, ((0, 0), (0, c_pad - C)))        # (2H, Cp)
    bfc = jnp.pad(params["b_fc"], (0, c_pad - C)).reshape(1, c_pad)
    emb = jnp.pad(params["embedding"], ((0, 0), (0, e_pad - E)))     # (V, Ep)
    return dict(emb=emb, wih_f=wih_f, whh_f=whh_f, b_f=b_f,
                wih_b=wih_b, whh_b=whh_b, b_b=b_b, wfc=wfc, bfc=bfc)


# --------------------------------------------------------------------------
# Wrapper
# --------------------------------------------------------------------------
def lstm_classifier_forward(text, lengths, params, *, time_tile=4, batch_tile=8):
    B, T = text.shape
    H = params["w_hh_f"].shape[1]
    E = params["w_ih_f"].shape[1]
    C = params["w_fc"].shape[0]

    E_pad = _round_up(E, 128)          # lane-dense activations
    C_pad = _round_up(C, 128)          # unmasked output stores
    Bt = batch_tile                    # sublane multiple; megacore shard unit
    B_pad = _round_up(B, Bt)
    nB = B_pad // Bt
    Tt = min(time_tile, T)
    T_pad = _round_up(T, Tt)
    nT = T_pad // Tt

    kp = prepare_kernel_params(params, E_pad, C_pad)

    # Embedding lookup directly in time-major order (no activation transpose
    # pass). Dropout is identity in eval mode. Padded rows/steps are masked
    # out inside the kernel via `lengths`.
    x_tbe = jnp.take(kp["emb"], text.T.astype(jnp.int32), axis=0)   # (T, B, Ep)
    x_tbe = jnp.pad(x_tbe, ((0, T_pad - T), (0, B_pad - B), (0, 0))
                    ).astype(jnp.float32)                           # (Tp, Bp, Ep)
    lengths_p = jnp.pad(lengths.astype(jnp.int32), (0, B_pad - B)).reshape(B_pad, 1)

    x_fwd_spec = pl.BlockSpec((Tt, Bt, E_pad), lambda b, t: (t, b, 0))
    x_bwd_spec = pl.BlockSpec((Tt, Bt, E_pad), lambda b, t: (nT - 1 - t, b, 0))
    len_spec = pl.BlockSpec((Bt, 1), lambda b, t: (b, 0))
    const = lambda b, t: (0, 0)        # weights stay resident across the grid

    out = pl.pallas_call(
        lstm_classifier_kernel,
        out_shape=jax.ShapeDtypeStruct((B_pad, C_pad), jnp.float32),
        grid_spec=pltpu.PrefetchScalarGridSpec(
            num_scalar_prefetch=0,
            grid=(nB, nT),
            in_specs=[
                x_fwd_spec,                                   # x, forward tiles
                x_bwd_spec,                                   # x, reversed tiles
                len_spec,                                     # lengths
                pl.BlockSpec((E_pad, 4 * H), const),          # wih_f
                pl.BlockSpec((H, 4 * H), const),              # whh_f
                pl.BlockSpec((1, 4 * H), const),              # b_f
                pl.BlockSpec((E_pad, 4 * H), const),          # wih_b
                pl.BlockSpec((H, 4 * H), const),              # whh_b
                pl.BlockSpec((1, 4 * H), const),              # b_b
                pl.BlockSpec((2 * H, C_pad), const),          # wfc
                pl.BlockSpec((1, C_pad), const),              # bfc
            ],
            out_specs=pl.BlockSpec((Bt, C_pad), lambda b, t: (b, 0)),
            scratch_shapes=[
                pltpu.VMEM((Bt, H), jnp.float32),             # h_fwd (persistent)
                pltpu.VMEM((Bt, H), jnp.float32),             # c_fwd
                pltpu.VMEM((Bt, H), jnp.float32),             # h_bwd
                pltpu.VMEM((Bt, H), jnp.float32),             # c_bwd
                pltpu.VMEM((Tt, Bt, 4 * H), jnp.float32),     # hoisted fwd gates
                pltpu.VMEM((Tt, Bt, 4 * H), jnp.float32),     # hoisted bwd gates
            ],
        ),
        compiler_params=pltpu.CompilerParams(
            dimension_semantics=("parallel", "arbitrary"),
            vmem_limit_bytes=64 * 1024 * 1024,
        ),
    )(x_tbe, x_tbe, lengths_p,
      kp["wih_f"], kp["whh_f"], kp["b_f"],
      kp["wih_b"], kp["whh_b"], kp["b_b"],
      kp["wfc"], kp["bfc"])

    return out[:B, :C]


# --------------------------------------------------------------------------
# Parameters (PyTorch layout) and pure-JAX reference
# --------------------------------------------------------------------------
def make_params(key, vocab_size, embed_dim, hidden_dim, num_classes):
    ks = jax.random.split(key, 12)
    s = 0.1
    H = hidden_dim

    def rnd(k, shape):
        return s * jax.random.normal(k, shape, jnp.float32)

    return {
        "embedding": rnd(ks[0], (vocab_size, embed_dim)),
        # PyTorch nn.LSTM parameter layout, gate order [i, f, g, o].
        "w_ih_f": rnd(ks[1], (4 * H, embed_dim)),
        "w_hh_f": rnd(ks[2], (4 * H, H)),
        "b_ih_f": rnd(ks[3], (4 * H,)),
        "b_hh_f": rnd(ks[4], (4 * H,)),
        "w_ih_b": rnd(ks[5], (4 * H, embed_dim)),
        "w_hh_b": rnd(ks[6], (4 * H, H)),
        "b_ih_b": rnd(ks[7], (4 * H,)),
        "b_hh_b": rnd(ks[8], (4 * H,)),
        "w_fc": rnd(ks[9], (num_classes, 2 * hidden_dim)),
        "b_fc": rnd(ks[10], (num_classes,)),
    }


def reference_forward(text, lengths, params):
    """Pure-JAX mirror of the PyTorch forward (eval mode)."""
    emb = jnp.take(params["embedding"], text, axis=0)        # (B, T, E)
    B, T, _ = emb.shape
    H = params["w_hh_f"].shape[1]

    def cell(x_t, h, c, w_ih, w_hh, b_ih, b_hh):
        gates = x_t @ w_ih.T + h @ w_hh.T + b_ih + b_hh      # [i, f, g, o]
        i = jax.nn.sigmoid(gates[:, 0 * H:1 * H])
        f = jax.nn.sigmoid(gates[:, 1 * H:2 * H])
        g = jnp.tanh(gates[:, 2 * H:3 * H])
        o = jax.nn.sigmoid(gates[:, 3 * H:4 * H])
        c_new = f * c + i * g
        h_new = o * jnp.tanh(c_new)
        return h_new, c_new

    def run(time_indices, w_ih, w_hh, b_ih, b_hh):
        h = jnp.zeros((B, H), jnp.float32)
        c = jnp.zeros((B, H), jnp.float32)
        for t in time_indices:
            h_new, c_new = cell(emb[:, t, :], h, c, w_ih, w_hh, b_ih, b_hh)
            valid = (t < lengths)[:, None]
            h = jnp.where(valid, h_new, h)
            c = jnp.where(valid, c_new, c)
        return h

    h_f = run(range(T), params["w_ih_f"], params["w_hh_f"],
              params["b_ih_f"], params["b_hh_f"])
    h_b = run(range(T - 1, -1, -1), params["w_ih_b"], params["w_hh_b"],
              params["b_ih_b"], params["b_hh_b"])
    h_cat = jnp.concatenate([h_f, h_b], axis=1)
    return h_cat @ params["w_fc"].T + params["b_fc"]


if __name__ == "__main__":
    vocab_size, embed_dim, hidden_dim, num_classes = 50, 16, 32, 4
    B, T = 2, 8

    key = jax.random.PRNGKey(0)
    k_param, k_text = jax.random.split(key)
    params = make_params(k_param, vocab_size, embed_dim, hidden_dim, num_classes)

    text = jax.random.randint(k_text, (B, T), 0, vocab_size, dtype=jnp.int32)
    lengths = jnp.array([8, 5], dtype=jnp.int32)             # padded-seq lengths

    out = lstm_classifier_forward(text, lengths, params, time_tile=4, batch_tile=8)
    out = jax.block_until_ready(out)

    ref = reference_forward(text, lengths, params)
    assert out.shape == (B, num_classes)
    assert jnp.allclose(out, ref, atol=2e-3), (out, ref)

    print("KERNEL_OK")
</pallas_src>

<mosaic_0001>
module attributes {stable_mosaic.version = 11 : i64} {
  func.func @lstm_classifier_kernel(%arg0: i32, %arg1: i32, %arg2: memref<4x8x128xf32, #tpu.memory_space<vmem>>, %arg3: memref<4x8x128xf32, #tpu.memory_space<vmem>>, %arg4: memref<8x1xi32, #tpu.memory_space<vmem>>, %arg5: memref<128x128xf32, #tpu.memory_space<vmem>>, %arg6: memref<32x128xf32, #tpu.memory_space<vmem>>, %arg7: memref<1x128xf32, #tpu.memory_space<vmem>>, %arg8: memref<128x128xf32, #tpu.memory_space<vmem>>, %arg9: memref<32x128xf32, #tpu.memory_space<vmem>>, %arg10: memref<1x128xf32, #tpu.memory_space<vmem>>, %arg11: memref<64x128xf32, #tpu.memory_space<vmem>>, %arg12: memref<1x128xf32, #tpu.memory_space<vmem>>, %arg13: memref<8x128xf32, #tpu.memory_space<vmem>>, %arg14: memref<8x32xf32, #tpu.memory_space<vmem>>, %arg15: memref<8x32xf32, #tpu.memory_space<vmem>>, %arg16: memref<8x32xf32, #tpu.memory_space<vmem>>, %arg17: memref<8x32xf32, #tpu.memory_space<vmem>>, %arg18: memref<4x8x128xf32, #tpu.memory_space<vmem>>, %arg19: memref<4x8x128xf32, #tpu.memory_space<vmem>>) attributes {dimension_semantics = [#tpu.dimension_semantics<parallel>, #tpu.dimension_semantics<arbitrary>], iteration_bounds = array<i64: 1, 2>, scalar_prefetch = 0 : i64, scratch_operands = 6 : i64, tpu.core_type = #tpu.core_type<tc>, window_params = [{transform_indices = @transform_0, window_bounds = array<i64: 4, 8, 128>}, {transform_indices = @transform_1, window_bounds = array<i64: 4, 8, 128>}, {transform_indices = @transform_2, window_bounds = array<i64: 8, 1>}, {pipeline_mode = #tpu.pipeline_mode<synchronous>, transform_indices = @transform_3, window_bounds = array<i64: 128, 128>}, {pipeline_mode = #tpu.pipeline_mode<synchronous>, transform_indices = @transform_4, window_bounds = array<i64: 32, 128>}, {pipeline_mode = #tpu.pipeline_mode<synchronous>, transform_indices = @transform_5, window_bounds = array<i64: 1, 128>}, {pipeline_mode = #tpu.pipeline_mode<synchronous>, transform_indices = @transform_6, window_bounds = array<i64: 128, 128>}, {pipeline_mode = #tpu.pipeline_mode<synchronous>, transform_indices = @transform_7, window_bounds = array<i64: 32, 128>}, {pipeline_mode = #tpu.pipeline_mode<synchronous>, transform_indices = @transform_8, window_bounds = array<i64: 1, 128>}, {pipeline_mode = #tpu.pipeline_mode<synchronous>, transform_indices = @transform_9, window_bounds = array<i64: 64, 128>}, {pipeline_mode = #tpu.pipeline_mode<synchronous>, transform_indices = @transform_10, window_bounds = array<i64: 1, 128>}, {transform_indices = @transform_11, window_bounds = array<i64: 8, 128>}]} {
    %c0_i32 = arith.constant 0 : i32
    %0 = arith.cmpi eq, %arg1, %c0_i32 : i32
    %1 = arith.extui %0 : i1 to i32
    %c0_i32_0 = arith.constant 0 : i32
    %2 = arith.cmpi ne, %1, %c0_i32_0 : i32
    scf.if %2 {
      %cst_89 = arith.constant 0.000000e+00 : f32
      %283 = vector.broadcast %cst_89 : f32 to vector<8x32xf32>
      %c0_90 = arith.constant 0 : index
      %c0_91 = arith.constant 0 : index
      %284 = vector.load %arg14[%c0_90, %c0_91] : memref<8x32xf32, #tpu.memory_space<vmem>>, vector<8x32xf32>
      tpu.vector_store %arg14[%c0_90, %c0_91], %283 {strides = array<i32>} : memref<8x32xf32, #tpu.memory_space<vmem>>, vector<8x32xf32>,
      %cst_92 = arith.constant 0.000000e+00 : f32
      %285 = vector.broadcast %cst_92 : f32 to vector<8x32xf32>
      %c0_93 = arith.constant 0 : index
      %c0_94 = arith.constant 0 : index
      %286 = vector.load %arg15[%c0_93, %c0_94] : memref<8x32xf32, #tpu.memory_space<vmem>>, vector<8x32xf32>
      tpu.vector_store %arg15[%c0_93, %c0_94], %285 {strides = array<i32>} : memref<8x32xf32, #tpu.memory_space<vmem>>, vector<8x32xf32>,
      %cst_95 = arith.constant 0.000000e+00 : f32
      %287 = vector.broadcast %cst_95 : f32 to vector<8x32xf32>
      %c0_96 = arith.constant 0 : index
      %c0_97 = arith.constant 0 : index
      %288 = vector.load %arg16[%c0_96, %c0_97] : memref<8x32xf32, #tpu.memory_space<vmem>>, vector<8x32xf32>
      tpu.vector_store %arg16[%c0_96, %c0_97], %287 {strides = array<i32>} : memref<8x32xf32, #tpu.memory_space<vmem>>, vector<8x32xf32>,
      %cst_98 = arith.constant 0.000000e+00 : f32
      %289 = vector.broadcast %cst_98 : f32 to vector<8x32xf32>
      %c0_99 = arith.constant 0 : index
      %c0_100 = arith.constant 0 : index
      %290 = vector.load %arg17[%c0_99, %c0_100] : memref<8x32xf32, #tpu.memory_space<vmem>>, vector<8x32xf32>
      tpu.vector_store %arg17[%c0_99, %c0_100], %289 {strides = array<i32>} : memref<8x32xf32, #tpu.memory_space<vmem>>, vector<8x32xf32>,
    } else {
    }
    %c0 = arith.constant 0 : index
    %c0_1 = arith.constant 0 : index
    %c0_2 = arith.constant 0 : index
    %3 = vector.load %arg2[%c0, %c0_1, %c0_2] : memref<4x8x128xf32, #tpu.memory_space<vmem>>, vector<4x8x128xf32>
    %4 = vector.shape_cast %3 : vector<4x8x128xf32> to vector<32x128xf32>
    %c0_3 = arith.constant 0 : index
    %c0_4 = arith.constant 0 : index
    %c0_5 = arith.constant 0 : index
    %5 = vector.load %arg3[%c0_3, %c0_4, %c0_5] : memref<4x8x128xf32, #tpu.memory_space<vmem>>, vector<4x8x128xf32>
    %6 = vector.shape_cast %5 : vector<4x8x128xf32> to vector<32x128xf32>
    %c0_6 = arith.constant 0 : index
    %c0_7 = arith.constant 0 : index
    %7 = vector.load %arg5[%c0_6, %c0_7] : memref<128x128xf32, #tpu.memory_space<vmem>>, vector<128x128xf32>
    %cst = arith.constant dense<0.000000e+00> : vector<32x128xf32>
    %8 = tpu.matmul %4, %7, %cst {dimension_numbers = #tpu.dot_dimension_numbers<[1], [0], [0], [1], [0, 0, 1, 1], [], []>} : vector<32x128xf32>, vector<128x128xf32>, vector<32x128xf32> -> vector<32x128xf32>
    %c0_8 = arith.constant 0 : index
    %c0_9 = arith.constant 0 : index
    %9 = vector.load %arg7[%c0_8, %c0_9] : memref<1x128xf32, #tpu.memory_space<vmem>>, vector<1x128xf32>
    %10 = vector.broadcast %9 : vector<1x128xf32> to vector<32x128xf32>
    %11 = arith.addf %8, %10 : vector<32x128xf32>
    %12 = vector.shape_cast %11 : vector<32x128xf32> to vector<4x8x128xf32>
    %c0_10 = arith.constant 0 : index
    %c0_11 = arith.constant 0 : index
    %c0_12 = arith.constant 0 : index
    %13 = vector.load %arg18[%c0_10, %c0_11, %c0_12] : memref<4x8x128xf32, #tpu.memory_space<vmem>>, vector<4x8x128xf32>
    tpu.vector_store %arg18[%c0_10, %c0_11, %c0_12], %12 {strides = array<i32>} : memref<4x8x128xf32, #tpu.memory_space<vmem>>, vector<4x8x128xf32>,
    %c0_13 = arith.constant 0 : index
    %c0_14 = arith.constant 0 : index
    %14 = vector.load %arg8[%c0_13, %c0_14] : memref<128x128xf32, #tpu.memory_space<vmem>>, vector<128x128xf32>
    %cst_15 = arith.constant dense<0.000000e+00> : vector<32x128xf32>
    %15 = tpu.matmul %6, %14, %cst_15 {dimension_numbers = #tpu.dot_dimension_numbers<[1], [0], [0], [1], [0, 0, 1, 1], [], []>} : vector<32x128xf32>, vector<128x128xf32>, vector<32x128xf32> -> vector<32x128xf32>
    %c0_16 = arith.constant 0 : index
    %c0_17 = arith.constant 0 : index
    %16 = vector.load %arg10[%c0_16, %c0_17] : memref<1x128xf32, #tpu.memory_space<vmem>>, vector<1x128xf32>
    %17 = vector.broadcast %16 : vector<1x128xf32> to vector<32x128xf32>
    %18 = arith.addf %15, %17 : vector<32x128xf32>
    %19 = vector.shape_cast %18 : vector<32x128xf32> to vector<4x8x128xf32>
    %c0_18 = arith.constant 0 : index
    %c0_19 = arith.constant 0 : index
    %c0_20 = arith.constant 0 : index
    %20 = vector.load %arg19[%c0_18, %c0_19, %c0_20] : memref<4x8x128xf32, #tpu.memory_space<vmem>>, vector<4x8x128xf32>
    tpu.vector_store %arg19[%c0_18, %c0_19, %c0_20], %19 {strides = array<i32>} : memref<4x8x128xf32, #tpu.memory_space<vmem>>, vector<4x8x128xf32>,
    %c0_21 = arith.constant 0 : index
    %c0_22 = arith.constant 0 : index
    %21 = vector.load %arg4[%c0_21, %c0_22] : memref<8x1xi32, #tpu.memory_space<vmem>>, vector<8x1xi32>
    %c0_23 = arith.constant 0 : index
    %c0_24 = arith.constant 0 : index
    %22 = vector.load %arg6[%c0_23, %c0_24] : memref<32x128xf32, #tpu.memory_space<vmem>>, vector<32x128xf32>
    %c0_25 = arith.constant 0 : index
    %c0_26 = arith.constant 0 : index
    %23 = vector.load %arg9[%c0_25, %c0_26] : memref<32x128xf32, #tpu.memory_space<vmem>>, vector<32x128xf32>
    %c0_27 = arith.constant 0 : index
    %c0_28 = arith.constant 0 : index
    %24 = vector.load %arg14[%c0_27, %c0_28] : memref<8x32xf32, #tpu.memory_space<vmem>>, vector<8x32xf32>
    %c0_29 = arith.constant 0 : index
    %c0_30 = arith.constant 0 : index
    %25 = vector.load %arg15[%c0_29, %c0_30] : memref<8x32xf32, #tpu.memory_space<vmem>>, vector<8x32xf32>
    %c0_31 = arith.constant 0 : index
    %c0_32 = arith.constant 0 : index
    %26 = vector.load %arg16[%c0_31, %c0_32] : memref<8x32xf32, #tpu.memory_space<vmem>>, vector<8x32xf32>
    %c0_33 = arith.constant 0 : index
    %c0_34 = arith.constant 0 : index
    %27 = vector.load %arg17[%c0_33, %c0_34] : memref<8x32xf32, #tpu.memory_space<vmem>>, vector<8x32xf32>
    %c0_i32_35 = arith.constant 0 : i32
    %c4_i32 = arith.constant 4 : i32
    %28 = arith.muli %arg1, %c4_i32 : i32
    %29 = arith.addi %28, %c0_i32_35 : i32
    %c7_i32 = arith.constant 7 : i32
    %30 = arith.subi %c7_i32, %29 : i32
    %31 = arith.index_cast %c0_i32_35 : i32 to index
    %c0_36 = arith.constant 0 : index
    %c0_37 = arith.constant 0 : index
    %32 = vector.load %arg18[%31, %c0_36, %c0_37] : memref<4x8x128xf32, #tpu.memory_space<vmem>>, vector<1x8x128xf32>
    %33 = vector.shape_cast %32 : vector<1x8x128xf32> to vector<8x128xf32>
    %cst_38 = arith.constant dense<0.000000e+00> : vector<8x128xf32>
    %34 = tpu.matmul %24, %22, %cst_38 {dimension_numbers = #tpu.dot_dimension_numbers<[1], [0], [0], [1], [0, 0, 1, 1], [], []>} : vector<8x32xf32>, vector<32x128xf32>, vector<8x128xf32> -> vector<8x128xf32>
    %35 = arith.addf %33, %34 : vector<8x128xf32>
    %36 = vector.extract_strided_slice %35 {offsets = [0, 0], sizes = [8, 96], strides = [1, 1]} : vector<8x128xf32> to vector<8x96xf32>
    %37 = arith.negf %36 : vector<8x96xf32>
    %38 = math.exp %37 : vector<8x96xf32>
    %cst_39 = arith.constant 1.000000e+00 : f32
    %39 = vector.broadcast %cst_39 : f32 to vector<8x96xf32>
    %40 = arith.addf %39, %38 : vector<8x96xf32>
    %41 = arith.divf %39, %40 : vector<8x96xf32>
    %42 = vector.extract_strided_slice %35 {offsets = [0, 96], sizes = [8, 32], strides = [1, 1]} : vector<8x128xf32> to vector<8x32xf32>
    %43 = math.tanh %42 : vector<8x32xf32>
    %44 = vector.extract_strided_slice %41 {offsets = [0, 0], sizes = [8, 32], strides = [1, 1]} : vector<8x96xf32> to vector<8x32xf32>
    %45 = vector.extract_strided_slice %41 {offsets = [0, 32], sizes = [8, 32], strides = [1, 1]} : vector<8x96xf32> to vector<8x32xf32>
    %46 = vector.extract_strided_slice %41 {offsets = [0, 64], sizes = [8, 32], strides = [1, 1]} : vector<8x96xf32> to vector<8x32xf32>
    %47 = arith.mulf %45, %25 : vector<8x32xf32>
    %48 = arith.mulf %44, %43 : vector<8x32xf32>
    %49 = arith.addf %47, %48 : vector<8x32xf32>
    %50 = math.tanh %49 : vector<8x32xf32>
    %51 = arith.mulf %46, %50 : vector<8x32xf32>
    %c3_i32 = arith.constant 3 : i32
    %52 = arith.subi %c3_i32, %c0_i32_35 : i32
    %53 = arith.index_cast %52 : i32 to index
    %c0_40 = arith.constant 0 : index
    %c0_41 = arith.constant 0 : index
    %54 = vector.load %arg19[%53, %c0_40, %c0_41] : memref<4x8x128xf32, #tpu.memory_space<vmem>>, vector<1x8x128xf32>
    %55 = vector.shape_cast %54 : vector<1x8x128xf32> to vector<8x128xf32>
    %cst_42 = arith.constant dense<0.000000e+00> : vector<8x128xf32>
    %56 = tpu.matmul %26, %23, %cst_42 {dimension_numbers = #tpu.dot_dimension_numbers<[1], [0], [0], [1], [0, 0, 1, 1], [], []>} : vector<8x32xf32>, vector<32x128xf32>, vector<8x128xf32> -> vector<8x128xf32>
    %57 = arith.addf %55, %56 : vector<8x128xf32>
    %58 = vector.extract_strided_slice %57 {offsets = [0, 0], sizes = [8, 96], strides = [1, 1]} : vector<8x128xf32> to vector<8x96xf32>
    %59 = arith.negf %58 : vector<8x96xf32>
    %60 = math.exp %59 : vector<8x96xf32>
    %cst_43 = arith.constant 1.000000e+00 : f32
    %61 = vector.broadcast %cst_43 : f32 to vector<8x96xf32>
    %62 = arith.addf %61, %60 : vector<8x96xf32>
    %63 = arith.divf %61, %62 : vector<8x96xf32>
    %64 = vector.extract_strided_slice %57 {offsets = [0, 96], sizes = [8, 32], strides = [1, 1]} : vector<8x128xf32> to vector<8x32xf32>
    %65 = math.tanh %64 : vector<8x32xf32>
    %66 = vector.extract_strided_slice %63 {offsets = [0, 0], sizes = [8, 32], strides = [1, 1]} : vector<8x96xf32> to vector<8x32xf32>
    %67 = vector.extract_strided_slice %63 {offsets = [0, 32], sizes = [8, 32], strides = [1, 1]} : vector<8x96xf32> to vector<8x32xf32>
    %68 = vector.extract_strided_slice %63 {offsets = [0, 64], sizes = [8, 32], strides = [1, 1]} : vector<8x96xf32> to vector<8x32xf32>
    %69 = arith.mulf %67, %27 : vector<8x32xf32>
    %70 = arith.mulf %66, %65 : vector<8x32xf32>
    %71 = arith.addf %69, %70 : vector<8x32xf32>
    %72 = math.tanh %71 : vector<8x32xf32>
    %73 = arith.mulf %68, %72 : vector<8x32xf32>
    %74 = vector.broadcast %29 : i32 to vector<8x1xi32>
    %75 = arith.cmpi slt, %74, %21 : vector<8x1xi32>
    %76 = vector.broadcast %30 : i32 to vector<8x1xi32>
    %77 = arith.cmpi slt, %76, %21 : vector<8x1xi32>
    %78 = vector.shape_cast %75 : vector<8x1xi1> to vector<8x1xi1>
    %79 = vector.broadcast %78 : vector<8x1xi1> to vector<8x32xi1>
    %80 = arith.select %79, %51, %24 : vector<8x32xi1>, vector<8x32xf32>
    %81 = vector.shape_cast %75 : vector<8x1xi1> to vector<8x1xi1>
    %82 = vector.broadcast %81 : vector<8x1xi1> to vector<8x32xi1>
    %83 = arith.select %82, %49, %25 : vector<8x32xi1>, vector<8x32xf32>
    %84 = vector.shape_cast %77 : vector<8x1xi1> to vector<8x1xi1>
    %85 = vector.broadcast %84 : vector<8x1xi1> to vector<8x32xi1>
    %86 = arith.select %85, %73, %26 : vector<8x32xi1>, vector<8x32xf32>
    %87 = vector.shape_cast %77 : vector<8x1xi1> to vector<8x1xi1>
    %88 = vector.broadcast %87 : vector<8x1xi1> to vector<8x32xi1>
    %89 = arith.select %88, %71, %27 : vector<8x32xi1>, vector<8x32xf32>
    %c1_i32 = arith.constant 1 : i32
    %c4_i32_44 = arith.constant 4 : i32
    %90 = arith.muli %arg1, %c4_i32_44 : i32
    %91 = arith.addi %90, %c1_i32 : i32
    %c7_i32_45 = arith.constant 7 : i32
    %92 = arith.subi %c7_i32_45, %91 : i32
    %93 = arith.index_cast %c1_i32 : i32 to index
    %c0_46 = arith.constant 0 : index
    %c0_47 = arith.constant 0 : index
    %94 = vector.load %arg18[%93, %c0_46, %c0_47] : memref<4x8x128xf32, #tpu.memory_space<vmem>>, vector<1x8x128xf32>
    %95 = vector.shape_cast %94 : vector<1x8x128xf32> to vector<8x128xf32>
    %cst_48 = arith.constant dense<0.000000e+00> : vector<8x128xf32>
    %96 = tpu.matmul %80, %22, %cst_48 {dimension_numbers = #tpu.dot_dimension_numbers<[1], [0], [0], [1], [0, 0, 1, 1], [], []>} : vector<8x32xf32>, vector<32x128xf32>, vector<8x128xf32> -> vector<8x128xf32>
    %97 = arith.addf %95, %96 : vector<8x128xf32>
    %98 = vector.extract_strided_slice %97 {offsets = [0, 0], sizes = [8, 96], strides = [1, 1]} : vector<8x128xf32> to vector<8x96xf32>
    %99 = arith.negf %98 : vector<8x96xf32>
    %100 = math.exp %99 : vector<8x96xf32>
    %cst_49 = arith.constant 1.000000e+00 : f32
    %101 = vector.broadcast %cst_49 : f32 to vector<8x96xf32>
    %102 = arith.addf %101, %100 : vector<8x96xf32>
    %103 = arith.divf %101, %102 : vector<8x96xf32>
    %104 = vector.extract_strided_slice %97 {offsets = [0, 96], sizes = [8, 32], strides = [1, 1]} : vector<8x128xf32> to vector<8x32xf32>
    %105 = math.tanh %104 : vector<8x32xf32>
    %106 = vector.extract_strided_slice %103 {offsets = [0, 0], sizes = [8, 32], strides = [1, 1]} : vector<8x96xf32> to vector<8x32xf32>
    %107 = vector.extract_strided_slice %103 {offsets = [0, 32], sizes = [8, 32], strides = [1, 1]} : vector<8x96xf32> to vector<8x32xf32>
    %108 = vector.extract_strided_slice %103 {offsets = [0, 64], sizes = [8, 32], strides = [1, 1]} : vector<8x96xf32> to vector<8x32xf32>
    %109 = arith.mulf %107, %83 : vector<8x32xf32>
    %110 = arith.mulf %106, %105 : vector<8x32xf32>
    %111 = arith.addf %109, %110 : vector<8x32xf32>
    %112 = math.tanh %111 : vector<8x32xf32>
    %113 = arith.mulf %108, %112 : vector<8x32xf32>
    %c3_i32_50 = arith.constant 3 : i32
    %114 = arith.subi %c3_i32_50, %c1_i32 : i32
    %115 = arith.index_cast %114 : i32 to index
    %c0_51 = arith.constant 0 : index
    %c0_52 = arith.constant 0 : index
    %116 = vector.load %arg19[%115, %c0_51, %c0_52] : memref<4x8x128xf32, #tpu.memory_space<vmem>>, vector<1x8x128xf32>
    %117 = vector.shape_cast %116 : vector<1x8x128xf32> to vector<8x128xf32>
    %cst_53 = arith.constant dense<0.000000e+00> : vector<8x128xf32>
    %118 = tpu.matmul %86, %23, %cst_53 {dimension_numbers = #tpu.dot_dimension_numbers<[1], [0], [0], [1], [0, 0, 1, 1], [], []>} : vector<8x32xf32>, vector<32x128xf32>, vector<8x128xf32> -> vector<8x128xf32>
    %119 = arith.addf %117, %118 : vector<8x128xf32>
    %120 = vector.extract_strided_slice %119 {offsets = [0, 0], sizes = [8, 96], strides = [1, 1]} : vector<8x128xf32> to vector<8x96xf32>
    %121 = arith.negf %120 : vector<8x96xf32>
    %122 = math.exp %121 : vector<8x96xf32>
    %cst_54 = arith.constant 1.000000e+00 : f32
    %123 = vector.broadcast %cst_54 : f32 to vector<8x96xf32>
    %124 = arith.addf %123, %122 : vector<8x96xf32>
    %125 = arith.divf %123, %124 : vector<8x96xf32>
    %126 = vector.extract_strided_slice %119 {offsets = [0, 96], sizes = [8, 32], strides = [1, 1]} : vector<8x128xf32> to vector<8x32xf32>
    %127 = math.tanh %126 : vector<8x32xf32>
    %128 = vector.extract_strided_slice %125 {offsets = [0, 0], sizes = [8, 32], strides = [1, 1]} : vector<8x96xf32> to vector<8x32xf32>
    %129 = vector.extract_strided_slice %125 {offsets = [0, 32], sizes = [8, 32], strides = [1, 1]} : vector<8x96xf32> to vector<8x32xf32>
    %130 = vector.extract_strided_slice %125 {offsets = [0, 64], sizes = [8, 32], strides = [1, 1]} : vector<8x96xf32> to vector<8x32xf32>
    %131 = arith.mulf %129, %89 : vector<8x32xf32>
    %132 = arith.mulf %128, %127 : vector<8x32xf32>
    %133 = arith.addf %131, %132 : vector<8x32xf32>
    %134 = math.tanh %133 : vector<8x32xf32>
    %135 = arith.mulf %130, %134 : vector<8x32xf32>
    %136 = vector.broadcast %91 : i32 to vector<8x1xi32>
    %137 = arith.cmpi slt, %136, %21 : vector<8x1xi32>
    %138 = vector.broadcast %92 : i32 to vector<8x1xi32>
    %139 = arith.cmpi slt, %138, %21 : vector<8x1xi32>
    %140 = vector.shape_cast %137 : vector<8x1xi1> to vector<8x1xi1>
    %141 = vector.broadcast %140 : vector<8x1xi1> to vector<8x32xi1>
    %142 = arith.select %141, %113, %80 : vector<8x32xi1>, vector<8x32xf32>
    %143 = vector.shape_cast %137 : vector<8x1xi1> to vector<8x1xi1>
    %144 = vector.broadcast %143 : vector<8x1xi1> to vector<8x32xi1>
    %145 = arith.select %144, %111, %83 : vector<8x32xi1>, vector<8x32xf32>
    %146 = vector.shape_cast %139 : vector<8x1xi1> to vector<8x1xi1>
    %147 = vector.broadcast %146 : vector<8x1xi1> to vector<8x32xi1>
    %148 = arith.select %147, %135, %86 : vector<8x32xi1>, vector<8x32xf32>
    %149 = vector.shape_cast %139 : vector<8x1xi1> to vector<8x1xi1>
    %150 = vector.broadcast %149 : vector<8x1xi1> to vector<8x32xi1>
    %151 = arith.select %150, %133, %89 : vector<8x32xi1>, vector<8x32xf32>
    %c2_i32 = arith.constant 2 : i32
    %c4_i32_55 = arith.constant 4 : i32
    %152 = arith.muli %arg1, %c4_i32_55 : i32
    %153 = arith.addi %152, %c2_i32 : i32
    %c7_i32_56 = arith.constant 7 : i32
    %154 = arith.subi %c7_i32_56, %153 : i32
    %155 = arith.index_cast %c2_i32 : i32 to index
    %c0_57 = arith.constant 0 : index
    %c0_58 = arith.constant 0 : index
    %156 = vector.load %arg18[%155, %c0_57, %c0_58] : memref<4x8x128xf32, #tpu.memory_space<vmem>>, vector<1x8x128xf32>
    %157 = vector.shape_cast %156 : vector<1x8x128xf32> to vector<8x128xf32>
    %cst_59 = arith.constant dense<0.000000e+00> : vector<8x128xf32>
    %158 = tpu.matmul %142, %22, %cst_59 {dimension_numbers = #tpu.dot_dimension_numbers<[1], [0], [0], [1], [0, 0, 1, 1], [], []>} : vector<8x32xf32>, vector<32x128xf32>, vector<8x128xf32> -> vector<8x128xf32>
    %159 = arith.addf %157, %158 : vector<8x128xf32>
    %160 = vector.extract_strided_slice %159 {offsets = [0, 0], sizes = [8, 96], strides = [1, 1]} : vector<8x128xf32> to vector<8x96xf32>
    %161 = arith.negf %160 : vector<8x96xf32>
    %162 = math.exp %161 : vector<8x96xf32>
    %cst_60 = arith.constant 1.000000e+00 : f32
    %163 = vector.broadcast %cst_60 : f32 to vector<8x96xf32>
    %164 = arith.addf %163, %162 : vector<8x96xf32>
    %165 = arith.divf %163, %164 : vector<8x96xf32>
    %166 = vector.extract_strided_slice %159 {offsets = [0, 96], sizes = [8, 32], strides = [1, 1]} : vector<8x128xf32> to vector<8x32xf32>
    %167 = math.tanh %166 : vector<8x32xf32>
    %168 = vector.extract_strided_slice %165 {offsets = [0, 0], sizes = [8, 32], strides = [1, 1]} : vector<8x96xf32> to vector<8x32xf32>
    %169 = vector.extract_strided_slice %165 {offsets = [0, 32], sizes = [8, 32], strides = [1, 1]} : vector<8x96xf32> to vector<8x32xf32>
    %170 = vector.extract_strided_slice %165 {offsets = [0, 64], sizes = [8, 32], strides = [1, 1]} : vector<8x96xf32> to vector<8x32xf32>
    %171 = arith.mulf %169, %145 : vector<8x32xf32>
    %172 = arith.mulf %168, %167 : vector<8x32xf32>
    %173 = arith.addf %171, %172 : vector<8x32xf32>
    %174 = math.tanh %173 : vector<8x32xf32>
    %175 = arith.mulf %170, %174 : vector<8x32xf32>
    %c3_i32_61 = arith.constant 3 : i32
    %176 = arith.subi %c3_i32_61, %c2_i32 : i32
    %177 = arith.index_cast %176 : i32 to index
    %c0_62 = arith.constant 0 : index
    %c0_63 = arith.constant 0 : index
    %178 = vector.load %arg19[%177, %c0_62, %c0_63] : memref<4x8x128xf32, #tpu.memory_space<vmem>>, vector<1x8x128xf32>
    %179 = vector.shape_cast %178 : vector<1x8x128xf32> to vector<8x128xf32>
    %cst_64 = arith.constant dense<0.000000e+00> : vector<8x128xf32>
    %180 = tpu.matmul %148, %23, %cst_64 {dimension_numbers = #tpu.dot_dimension_numbers<[1], [0], [0], [1], [0, 0, 1, 1], [], []>} : vector<8x32xf32>, vector<32x128xf32>, vector<8x128xf32> -> vector<8x128xf32>
    %181 = arith.addf %179, %180 : vector<8x128xf32>
    %182 = vector.extract_strided_slice %181 {offsets = [0, 0], sizes = [8, 96], strides = [1, 1]} : vector<8x128xf32> to vector<8x96xf32>
    %183 = arith.negf %182 : vector<8x96xf32>
    %184 = math.exp %183 : vector<8x96xf32>
    %cst_65 = arith.constant 1.000000e+00 : f32
    %185 = vector.broadcast %cst_65 : f32 to vector<8x96xf32>
    %186 = arith.addf %185, %184 : vector<8x96xf32>
    %187 = arith.divf %185, %186 : vector<8x96xf32>
    %188 = vector.extract_strided_slice %181 {offsets = [0, 96], sizes = [8, 32], strides = [1, 1]} : vector<8x128xf32> to vector<8x32xf32>
    %189 = math.tanh %188 : vector<8x32xf32>
    %190 = vector.extract_strided_slice %187 {offsets = [0, 0], sizes = [8, 32], strides = [1, 1]} : vector<8x96xf32> to vector<8x32xf32>
    %191 = vector.extract_strided_slice %187 {offsets = [0, 32], sizes = [8, 32], strides = [1, 1]} : vector<8x96xf32> to vector<8x32xf32>
    %192 = vector.extract_strided_slice %187 {offsets = [0, 64], sizes = [8, 32], strides = [1, 1]} : vector<8x96xf32> to vector<8x32xf32>
    %193 = arith.mulf %191, %151 : vector<8x32xf32>
    %194 = arith.mulf %190, %189 : vector<8x32xf32>
    %195 = arith.addf %193, %194 : vector<8x32xf32>
    %196 = math.tanh %195 : vector<8x32xf32>
    %197 = arith.mulf %192, %196 : vector<8x32xf32>
    %198 = vector.broadcast %153 : i32 to vector<8x1xi32>
    %199 = arith.cmpi slt, %198, %21 : vector<8x1xi32>
    %200 = vector.broadcast %154 : i32 to vector<8x1xi32>
    %201 = arith.cmpi slt, %200, %21 : vector<8x1xi32>
    %202 = vector.shape_cast %199 : vector<8x1xi1> to vector<8x1xi1>
    %203 = vector.broadcast %202 : vector<8x1xi1> to vector<8x32xi1>
    %204 = arith.select %203, %175, %142 : vector<8x32xi1>, vector<8x32xf32>
    %205 = vector.shape_cast %199 : vector<8x1xi1> to vector<8x1xi1>
    %206 = vector.broadcast %205 : vector<8x1xi1> to vector<8x32xi1>
    %207 = arith.select %206, %173, %145 : vector<8x32xi1>, vector<8x32xf32>
    %208 = vector.shape_cast %201 : vector<8x1xi1> to vector<8x1xi1>
    %209 = vector.broadcast %208 : vector<8x1xi1> to vector<8x32xi1>
    %210 = arith.select %209, %197, %148 : vector<8x32xi1>, vector<8x32xf32>
    %211 = vector.shape_cast %201 : vector<8x1xi1> to vector<8x1xi1>
    %212 = vector.broadcast %211 : vector<8x1xi1> to vector<8x32xi1>
    %213 = arith.select %212, %195, %151 : vector<8x32xi1>, vector<8x32xf32>
    %c3_i32_66 = arith.constant 3 : i32
    %c4_i32_67 = arith.constant 4 : i32
    %214 = arith.muli %arg1, %c4_i32_67 : i32
    %215 = arith.addi %214, %c3_i32_66 : i32
    %c7_i32_68 = arith.constant 7 : i32
    %216 = arith.subi %c7_i32_68, %215 : i32
    %217 = arith.index_cast %c3_i32_66 : i32 to index
    %c0_69 = arith.constant 0 : index
    %c0_70 = arith.constant 0 : index
    %218 = vector.load %arg18[%217, %c0_69, %c0_70] : memref<4x8x128xf32, #tpu.memory_space<vmem>>, vector<1x8x128xf32>
    %219 = vector.shape_cast %218 : vector<1x8x128xf32> to vector<8x128xf32>
    %cst_71 = arith.constant dense<0.000000e+00> : vector<8x128xf32>
    %220 = tpu.matmul %204, %22, %cst_71 {dimension_numbers = #tpu.dot_dimension_numbers<[1], [0], [0], [1], [0, 0, 1, 1], [], []>} : vector<8x32xf32>, vector<32x128xf32>, vector<8x128xf32> -> vector<8x128xf32>
    %221 = arith.addf %219, %220 : vector<8x128xf32>
    %222 = vector.extract_strided_slice %221 {offsets = [0, 0], sizes = [8, 96], strides = [1, 1]} : vector<8x128xf32> to vector<8x96xf32>
    %223 = arith.negf %222 : vector<8x96xf32>
    %224 = math.exp %223 : vector<8x96xf32>
    %cst_72 = arith.constant 1.000000e+00 : f32
    %225 = vector.broadcast %cst_72 : f32 to vector<8x96xf32>
    %226 = arith.addf %225, %224 : vector<8x96xf32>
    %227 = arith.divf %225, %226 : vector<8x96xf32>
    %228 = vector.extract_strided_slice %221 {offsets = [0, 96], sizes = [8, 32], strides = [1, 1]} : vector<8x128xf32> to vector<8x32xf32>
    %229 = math.tanh %228 : vector<8x32xf32>
    %230 = vector.extract_strided_slice %227 {offsets = [0, 0], sizes = [8, 32], strides = [1, 1]} : vector<8x96xf32> to vector<8x32xf32>
    %231 = vector.extract_strided_slice %227 {offsets = [0, 32], sizes = [8, 32], strides = [1, 1]} : vector<8x96xf32> to vector<8x32xf32>
    %232 = vector.extract_strided_slice %227 {offsets = [0, 64], sizes = [8, 32], strides = [1, 1]} : vector<8x96xf32> to vector<8x32xf32>
    %233 = arith.mulf %231, %207 : vector<8x32xf32>
    %234 = arith.mulf %230, %229 : vector<8x32xf32>
    %235 = arith.addf %233, %234 : vector<8x32xf32>
    %236 = math.tanh %235 : vector<8x32xf32>
    %237 = arith.mulf %232, %236 : vector<8x32xf32>
    %c3_i32_73 = arith.constant 3 : i32
    %238 = arith.subi %c3_i32_73, %c3_i32_66 : i32
    %239 = arith.index_cast %238 : i32 to index
    %c0_74 = arith.constant 0 : index
    %c0_75 = arith.constant 0 : index
    %240 = vector.load %arg19[%239, %c0_74, %c0_75] : memref<4x8x128xf32, #tpu.memory_space<vmem>>, vector<1x8x128xf32>
    %241 = vector.shape_cast %240 : vector<1x8x128xf32> to vector<8x128xf32>
    %cst_76 = arith.constant dense<0.000000e+00> : vector<8x128xf32>
    %242 = tpu.matmul %210, %23, %cst_76 {dimension_numbers = #tpu.dot_dimension_numbers<[1], [0], [0], [1], [0, 0, 1, 1], [], []>} : vector<8x32xf32>, vector<32x128xf32>, vector<8x128xf32> -> vector<8x128xf32>
    %243 = arith.addf %241, %242 : vector<8x128xf32>
    %244 = vector.extract_strided_slice %243 {offsets = [0, 0], sizes = [8, 96], strides = [1, 1]} : vector<8x128xf32> to vector<8x96xf32>
    %245 = arith.negf %244 : vector<8x96xf32>
    %246 = math.exp %245 : vector<8x96xf32>
    %cst_77 = arith.constant 1.000000e+00 : f32
    %247 = vector.broadcast %cst_77 : f32 to vector<8x96xf32>
    %248 = arith.addf %247, %246 : vector<8x96xf32>
    %249 = arith.divf %247, %248 : vector<8x96xf32>
    %250 = vector.extract_strided_slice %243 {offsets = [0, 96], sizes = [8, 32], strides = [1, 1]} : vector<8x128xf32> to vector<8x32xf32>
    %251 = math.tanh %250 : vector<8x32xf32>
    %252 = vector.extract_strided_slice %249 {offsets = [0, 0], sizes = [8, 32], strides = [1, 1]} : vector<8x96xf32> to vector<8x32xf32>
    %253 = vector.extract_strided_slice %249 {offsets = [0, 32], sizes = [8, 32], strides = [1, 1]} : vector<8x96xf32> to vector<8x32xf32>
    %254 = vector.extract_strided_slice %249 {offsets = [0, 64], sizes = [8, 32], strides = [1, 1]} : vector<8x96xf32> to vector<8x32xf32>
    %255 = arith.mulf %253, %213 : vector<8x32xf32>
    %256 = arith.mulf %252, %251 : vector<8x32xf32>
    %257 = arith.addf %255, %256 : vector<8x32xf32>
    %258 = math.tanh %257 : vector<8x32xf32>
    %259 = arith.mulf %254, %258 : vector<8x32xf32>
    %260 = vector.broadcast %215 : i32 to vector<8x1xi32>
    %261 = arith.cmpi slt, %260, %21 : vector<8x1xi32>
    %262 = vector.broadcast %216 : i32 to vector<8x1xi32>
    %263 = arith.cmpi slt, %262, %21 : vector<8x1xi32>
    %264 = vector.shape_cast %261 : vector<8x1xi1> to vector<8x1xi1>
    %265 = vector.broadcast %264 : vector<8x1xi1> to vector<8x32xi1>
    %266 = arith.select %265, %237, %204 : vector<8x32xi1>, vector<8x32xf32>
    %267 = vector.shape_cast %261 : vector<8x1xi1> to vector<8x1xi1>
    %268 = vector.broadcast %267 : vector<8x1xi1> to vector<8x32xi1>
    %269 = arith.select %268, %235, %207 : vector<8x32xi1>, vector<8x32xf32>
    %270 = vector.shape_cast %263 : vector<8x1xi1> to vector<8x1xi1>
    %271 = vector.broadcast %270 : vector<8x1xi1> to vector<8x32xi1>
    %272 = arith.select %271, %259, %210 : vector<8x32xi1>, vector<8x32xf32>
    %273 = vector.shape_cast %263 : vector<8x1xi1> to vector<8x1xi1>
    %274 = vector.broadcast %273 : vector<8x1xi1> to vector<8x32xi1>
    %275 = arith.select %274, %257, %213 : vector<8x32xi1>, vector<8x32xf32>
    %c4_i32_78 = arith.constant 4 : i32
    %c0_79 = arith.constant 0 : index
    %c0_80 = arith.constant 0 : index
    %276 = vector.load %arg14[%c0_79, %c0_80] : memref<8x32xf32, #tpu.memory_space<vmem>>, vector<8x32xf32>
    tpu.vector_store %arg14[%c0_79, %c0_80], %266 {strides = array<i32>} : memref<8x32xf32, #tpu.memory_space<vmem>>, vector<8x32xf32>,
    %c0_81 = arith.constant 0 : index
    %c0_82 = arith.constant 0 : index
    %277 = vector.load %arg15[%c0_81, %c0_82] : memref<8x32xf32, #tpu.memory_space<vmem>>, vector<8x32xf32>
    tpu.vector_store %arg15[%c0_81, %c0_82], %269 {strides = array<i32>} : memref<8x32xf32, #tpu.memory_space<vmem>>, vector<8x32xf32>,
    %c0_83 = arith.constant 0 : index
    %c0_84 = arith.constant 0 : index
    %278 = vector.load %arg16[%c0_83, %c0_84] : memref<8x32xf32, #tpu.memory_space<vmem>>, vector<8x32xf32>
    tpu.vector_store %arg16[%c0_83, %c0_84], %272 {strides = array<i32>} : memref<8x32xf32, #tpu.memory_space<vmem>>, vector<8x32xf32>,
    %c0_85 = arith.constant 0 : index
    %c0_86 = arith.constant 0 : index
    %279 = vector.load %arg17[%c0_85, %c0_86] : memref<8x32xf32, #tpu.memory_space<vmem>>, vector<8x32xf32>
    tpu.vector_store %arg17[%c0_85, %c0_86], %275 {strides = array<i32>} : memref<8x32xf32, #tpu.memory_space<vmem>>, vector<8x32xf32>,
    %c1_i32_87 = arith.constant 1 : i32
    %280 = arith.cmpi eq, %arg1, %c1_i32_87 : i32
    %281 = arith.extui %280 : i1 to i32
    %c0_i32_88 = arith.constant 0 : i32
    %282 = arith.cmpi ne, %281, %c0_i32_88 : i32
    scf.if %282 {
      %c0_89 = arith.constant 0 : index
      %c0_90 = arith.constant 0 : index
      %283 = vector.load %arg11[%c0_89, %c0_90] : memref<64x128xf32, #tpu.memory_space<vmem>>, vector<32x128xf32>
      %cst_91 = arith.constant dense<0.000000e+00> : vector<8x128xf32>
      %284 = tpu.matmul %266, %283, %cst_91 {dimension_numbers = #tpu.dot_dimension_numbers<[1], [0], [0], [1], [0, 0, 1, 1], [], []>} : vector<8x32xf32>, vector<32x128xf32>, vector<8x128xf32> -> vector<8x128xf32>
      %c32 = arith.constant 32 : index
      %c0_92 = arith.constant 0 : index
      %285 = vector.load %arg11[%c32, %c0_92] : memref<64x128xf32, #tpu.memory_space<vmem>>, vector<32x128xf32>
      %cst_93 = arith.constant dense<0.000000e+00> : vector<8x128xf32>
      %286 = tpu.matmul %272, %285, %cst_93 {dimension_numbers = #tpu.dot_dimension_numbers<[1], [0], [0], [1], [0, 0, 1, 1], [], []>} : vector<8x32xf32>, vector<32x128xf32>, vector<8x128xf32> -> vector<8x128xf32>
      %287 = arith.addf %284, %286 : vector<8x128xf32>
      %c0_94 = arith.constant 0 : index
      %c0_95 = arith.constant 0 : index
      %288 = vector.load %arg12[%c0_94, %c0_95] : memref<1x128xf32, #tpu.memory_space<vmem>>, vector<1x128xf32>
      %289 = vector.broadcast %288 : vector<1x128xf32> to vector<8x128xf32>
      %290 = arith.addf %287, %289 : vector<8x128xf32>
      %c0_96 = arith.constant 0 : index
      %c0_97 = arith.constant 0 : index
      %291 = vector.load %arg13[%c0_96, %c0_97] : memref<8x128xf32, #tpu.memory_space<vmem>>, vector<8x128xf32>
      tpu.vector_store %arg13[%c0_96, %c0_97], %290 {strides = array<i32>} : memref<8x128xf32, #tpu.memory_space<vmem>>, vector<8x128xf32>,
    } else {
    }
    return
  }
  func.func @transform_0(%arg0: i32, %arg1: i32) -> (i32, i32, i32) {
    %c0_i32 = arith.constant 0 : i32
    %c0_i32_0 = arith.constant 0 : i32
    return %arg1, %arg0, %c0_i32 : i32, i32, i32
  }
  func.func @transform_1(%arg0: i32, %arg1: i32) -> (i32, i32, i32) {
    %c1_i32 = arith.constant 1 : i32
    %0 = arith.subi %c1_i32, %arg1 : i32
    %c0_i32 = arith.constant 0 : i32
    %c0_i32_0 = arith.constant 0 : i32
    return %0, %arg0, %c0_i32 : i32, i32, i32
  }
  func.func @transform_2(%arg0: i32, %arg1: i32) -> (i32, i32) {
    %c0_i32 = arith.constant 0 : i32
    %c0_i32_0 = arith.constant 0 : i32
    return %arg0, %c0_i32 : i32, i32
  }
  func.func @transform_3(%arg0: i32, %arg1: i32) -> (i32, i32) {
    %c0_i32 = arith.constant 0 : i32
    %c0_i32_0 = arith.constant 0 : i32
    %c0_i32_1 = arith.constant 0 : i32
    return %c0_i32, %c0_i32_0 : i32, i32
  }
  func.func @transform_4(%arg0: i32, %arg1: i32) -> (i32, i32) {
    %c0_i32 = arith.constant 0 : i32
    %c0_i32_0 = arith.constant 0 : i32
    %c0_i32_1 = arith.constant 0 : i32
    return %c0_i32, %c0_i32_0 : i32, i32
  }
  func.func @transform_5(%arg0: i32, %arg1: i32) -> (i32, i32) {
    %c0_i32 = arith.constant 0 : i32
    %c0_i32_0 = arith.constant 0 : i32
    %c0_i32_1 = arith.constant 0 : i32
    return %c0_i32, %c0_i32_0 : i32, i32
  }
  func.func @transform_6(%arg0: i32, %arg1: i32) -> (i32, i32) {
    %c0_i32 = arith.constant 0 : i32
    %c0_i32_0 = arith.constant 0 : i32
    %c0_i32_1 = arith.constant 0 : i32
    return %c0_i32, %c0_i32_0 : i32, i32
  }
  func.func @transform_7(%arg0: i32, %arg1: i32) -> (i32, i32) {
    %c0_i32 = arith.constant 0 : i32
    %c0_i32_0 = arith.constant 0 : i32
    %c0_i32_1 = arith.constant 0 : i32
    return %c0_i32, %c0_i32_0 : i32, i32
  }
  func.func @transform_8(%arg0: i32, %arg1: i32) -> (i32, i32) {
    %c0_i32 = arith.constant 0 : i32
    %c0_i32_0 = arith.constant 0 : i32
    %c0_i32_1 = arith.constant 0 : i32
    return %c0_i32, %c0_i32_0 : i32, i32
  }
  func.func @transform_9(%arg0: i32, %arg1: i32) -> (i32, i32) {
    %c0_i32 = arith.constant 0 : i32
    %c0_i32_0 = arith.constant 0 : i32
    %c0_i32_1 = arith.constant 0 : i32
    return %c0_i32, %c0_i32_0 : i32, i32
  }
  func.func @transform_10(%arg0: i32, %arg1: i32) -> (i32, i32) {
    %c0_i32 = arith.constant 0 : i32
    %c0_i32_0 = arith.constant 0 : i32
    %c0_i32_1 = arith.constant 0 : i32
    return %c0_i32, %c0_i32_0 : i32, i32
  }
  func.func @transform_11(%arg0: i32, %arg1: i32) -> (i32, i32) {
    %c0_i32 = arith.constant 0 : i32
    %c0_i32_0 = arith.constant 0 : i32
    return %arg0, %c0_i32 : i32, i32
  }
}

</mosaic_0001>

<llo_original>
// kernel: tpu_custom_call.1
$region0: #{tpu_custom_call.1}
  #allocation0 [shape = 'u32[]', space=smem, size = 0x4, offset = 0x4, fixed_abs, tag = 'smem constant byte address 0x4 - core index']
  #allocation1 [shape = 'u32[144,128]{1,0:T(1,128)}', space=vmem, size = 0x12000, scoped, tag = 'internal scratch']
  #allocation2 [shape = 'f32[8,32]{1,0:T(8,128)}', space=vmem, size = 0x1000, scoped, tag = 'scratch operand']
  #allocation3 [shape = 'f32[8,32]{1,0:T(8,128)}', space=vmem, size = 0x1000, scoped, tag = 'scratch operand']
  #allocation4 [shape = 'f32[8,32]{1,0:T(8,128)}', space=vmem, size = 0x1000, scoped, tag = 'scratch operand']
  #allocation5 [shape = 'f32[8,32]{1,0:T(8,128)}', space=vmem, size = 0x1000, scoped, tag = 'scratch operand']
  #allocation6 [shape = 'f32[4,8,128]{2,1,0:T(8,128)}', space=vmem, size = 0x4000, scoped, tag = 'scratch operand']
  #allocation7 [shape = 'f32[4,8,128]{2,1,0:T(8,128)}', space=vmem, size = 0x4000, scoped, tag = 'scratch operand']
  %s0 = inlined_call_operand.hbm [shape: f32[8,8,128], index: 0, kind: input, shape index: {}]
  %s1 = inlined_call_operand.hbm [shape: f32[8,8,128], index: 1, kind: input, shape index: {}]
  %s2 = inlined_call_operand.hbm [shape: s32[8,1], index: 2, kind: input, shape index: {}]
  %s3 = inlined_call_operand.hbm [shape: f32[128,128], index: 3, kind: input, shape index: {}]
  %s4 = inlined_call_operand.hbm [shape: f32[32,128], index: 4, kind: input, shape index: {}]
  %s5 = inlined_call_operand.hbm [shape: f32[1,128], index: 5, kind: input, shape index: {}]
  %s6 = inlined_call_operand.hbm [shape: f32[128,128], index: 6, kind: input, shape index: {}]
  %s7 = inlined_call_operand.hbm [shape: f32[32,128], index: 7, kind: input, shape index: {}]
  %s8 = inlined_call_operand.hbm [shape: f32[1,128], index: 8, kind: input, shape index: {}]
  %s9 = inlined_call_operand.hbm [shape: f32[64,128], index: 9, kind: input, shape index: {}]
  %s10 = inlined_call_operand.hbm [shape: f32[1,128], index: 10, kind: input, shape index: {}]
  %s11 = inlined_call_operand.hbm [shape: f32[8,128], index: 11, kind: output, shape index: {}]
  %s12 = sld [smem:[#allocation0]]
  $region129: #{tpu_custom_call.1} parent=0
    _
  %s14 = ssub.s32 1, %s12
  %s15 = scalar_select 0, %s14, %s12
  $region1: #{tpu_custom_call.1} parent=0
    #allocation8 [shape = 'u8[32768]{0}', space=vmem, size = 0x8000, scoped, tag = 'input window, operand 0']
    #allocation9 [shape = 's32[2]{0}', space=sflag, size = 0x8, scoped, tag = 'scoped memory for tpu_custom_call.1']
    #allocation10 [shape = 's32[2]{0}', space=sflag, size = 0x8, scoped, tag = 'scoped memory for tpu_custom_call.1']
    #allocation11 [shape = 'u8[32768]{0}', space=vmem, size = 0x8000, scoped, tag = 'input window, operand 1']
    #allocation12 [shape = 's32[2]{0}', space=sflag, size = 0x8, scoped, tag = 'scoped memory for tpu_custom_call.1']
    #allocation13 [shape = 'u8[4096]{0}', space=vmem, size = 0x1000, scoped, tag = 'input window, operand 2, single buffered']
    #allocation14 [shape = 'u8[65536]{0}', space=vmem, size = 0x10000, scoped, tag = 'input window, operand 3, single buffered']
    #allocation15 [shape = 's32[1]{0}', space=sflag, size = 0x4, scoped, tag = 'scoped memory for tpu_custom_call.1']
    #allocation16 [shape = 'u8[16384]{0}', space=vmem, size = 0x4000, scoped, tag = 'input window, operand 4, single buffered']
    #allocation17 [shape = 'u8[512]{0}', space=vmem, size = 0x400, scoped, tag = 'input window, operand 5, single buffered']
    #allocation18 [shape = 's32[1]{0}', space=sflag, size = 0x4, scoped, tag = 'scoped memory for tpu_custom_call.1']
    #allocation19 [shape = 'u8[65536]{0}', space=vmem, size = 0x10000, scoped, tag = 'input window, operand 6, single buffered']
    #allocation20 [shape = 'u8[16384]{0}', space=vmem, size = 0x4000, scoped, tag = 'input window, operand 7, single buffered']
    #allocation21 [shape = 's32[1]{0}', space=sflag, size = 0x4, scoped, tag = 'scoped memory for tpu_custom_call.1']
    #allocation22 [shape = 'u8[512]{0}', space=vmem, size = 0x400, scoped, tag = 'input window, operand 8, single buffered']
    #allocation23 [shape = 'u8[32768]{0}', space=vmem, size = 0x8000, scoped, tag = 'input window, operand 9, single buffered']
    #allocation24 [shape = 's32[1]{0}', space=sflag, size = 0x4, scoped, tag = 'scoped memory for tpu_custom_call.1']
    #allocation25 [shape = 'u8[512]{0}', space=vmem, size = 0x400, scoped, tag = 'input window, operand 10, single buffered']
    #allocation26 [shape = 'u8[4096]{0}', space=vmem, size = 0x1000, scoped, tag = 'output window, operand 0, single buffered']
    %16 = vsyncpa [#allocation9], 0
    %s17 = scalar_lea.sflag [#allocation9], 1
    %18 = vsyncpa %s17, 0
    %19 = vsyncpa [#allocation12], 0
    %s20 = scalar_lea.sflag [#allocation12], 1
    %21 = vsyncpa %s20, 0
    %22 = vsyncpa [#allocation15], 0
    %23 = vsyncpa [#allocation18], 0
    %24 = vsyncpa [#allocation21], 0
    %25 = vsyncpa [#allocation24], 0
    %26 = vsyncpa [#allocation10], 0
    loop: start=0, step=1, limit=4
    $region2: #{tpu_custom_call.1} parent=1 // loop_pre_header
      _
    $region3: #{tpu_custom_call.1} parent=1 // loop_header
      %s28 = sphi 0, %s32
      %p29 = scmp.ge.s32.totalorder %s28, 4
      %s35 = sphi 0, %s47
      %s36 = sphi 0, %s43
      %s37 = sphi 0, %s35
      %s38 = sphi 0, %s36
      %s39 = sphi 0, %s37
      %s40 = sphi 0, %s38
      %s52 = sphi 0, %s54
      %s55 = sphi 0, %s52
      %s56 = sphi 0, %s55
      %s72 = sphi 0, %s56
      %s82 = sphi 0, %s84
      %s85 = sphi 0, %s82
      %s86 = sphi 0, %s85
      %s102 = sphi 0, %s86
      %s108 = sphi 0, %s110
      %s111 = sphi 0, %s108
      %s112 = sphi 0, %s111
      %s128 = sphi 0, %s112
      %s132 = sphi 0, %s132
      %s134 = sphi 0, %s132
      %s135 = sphi 0, %s134
      %s149 = sphi 0, %s135
      %s153 = sphi 0, %s153
      %s155 = sphi 0, %s153
      %s156 = sphi 0, %s155
      %s170 = sphi 0, %s156
      %s174 = sphi 0, %s174
      %s176 = sphi 0, %s174
      %s177 = sphi 0, %s176
      %s191 = sphi 0, %s177
      %s195 = sphi 0, %s195
      %s197 = sphi 0, %s195
      %s198 = sphi 0, %s197
      %s212 = sphi 0, %s198
      %s216 = sphi 0, %s216
      %s218 = sphi 0, %s216
      %s219 = sphi 0, %s218
      %s233 = sphi 0, %s219
      %s237 = sphi 0, %s237
      %s239 = sphi 0, %s237
      %s240 = sphi 0, %s239
      %s254 = sphi 0, %s240
      %s258 = sphi 0, %s258
      %s260 = sphi 0, %s258
      %s261 = sphi 0, %s260
      %s275 = sphi 0, %s261
      %s279 = sphi 0, %s279
      %s281 = sphi 0, %s279
      %s282 = sphi 0, %s281
      %s296 = sphi 0, %s282
      %s302 = sphi 0, %s304
      %s305 = sphi 0, %s302
      %s306 = sphi 0, %s305
      %s322 = sphi 0, %s306
    $region4: #{tpu_custom_call.1} parent=1 // loop_header_branch
      %31 = sbr.rel (%p29) target = $region8
    $region5: #{tpu_custom_call.1} parent=1 // loop_body
      %s33 = ssub.s32 %s28, 1
      %s34 = ssub.s32 %s28, 2
      %s41 = sadd.s32 1, %s36
      %p42 = scmp.ge.s32.totalorder %s41, 2
      %s43 = scalar_select %p42, 0, %s41
      %s44 = sadd.s32 1, %s35
      %s45 = scalar_select %p42, %s44, %s35
      %p46 = scmp.ge.s32.totalorder %s45, 1
      %s47 = scalar_select %p46, 0, %s45
      %s48 = ssub.s32 %s36, %s43
      %s49 = ssub.s32 %s35, %s47
      %s50 = sor.u32 %s48, %s49
      %p51 = scmp.eq.s32.totalorder %s50, 0
      %s53 = sadd.s32 %s52, 1
      %s54 = scalar_select %p51, %s52, %s53
      %p57 = pneg %p51
      %p58 = scmp.eq.s32.totalorder %s28, 1
      %p59 = por %p57, %p58
      %p60 = scmp.ne.s32.totalorder %s52, %s55
      %p61 = scmp.eq.s32.totalorder %s28, 0
      %p62 = por %p60, %p61
      %p63 = scmp.ne.s32.totalorder %s52, %s55
      %p64 = scmp.eq.s32.totalorder %s33, 1
      %p65 = por %p63, %p64
      %p66 = scmp.ne.s32.totalorder %s55, %s56
      %p67 = scmp.eq.s32.totalorder %s33, 0
      %p68 = por %p66, %p67
      %p69 = scmp.ne.s32.totalorder %s55, %s56
      %p70 = scmp.eq.s32.totalorder %s34, 1
      %p71 = por %p69, %p70
      %p73 = scmp.ne.s32.totalorder %s56, %s72
      %p74 = scmp.eq.s32.totalorder %s34, 0
      %p75 = por %p73, %p74
      %s76 = ssub.s32 1, %s36
      %s77 = ssub.s32 1, %s43
      %s78 = ssub.s32 %s76, %s77
      %s79 = ssub.s32 %s35, %s47
      %s80 = sor.u32 %s78, %s79
      %p81 = scmp.eq.s32.totalorder %s80, 0
      %s83 = sadd.s32 %s82, 1
      %s84 = scalar_select %p81, %s82, %s83
      %p87 = pneg %p81
      %p88 = scmp.eq.s32.totalorder %s28, 1
      %p89 = por %p87, %p88
      %p90 = scmp.ne.s32.totalorder %s82, %s85
      %p91 = scmp.eq.s32.totalorder %s28, 0
      %p92 = por %p90, %p91
      %p93 = scmp.ne.s32.totalorder %s82, %s85
      %p94 = scmp.eq.s32.totalorder %s33, 1
      %p95 = por %p93, %p94
      %p96 = scmp.ne.s32.totalorder %s85, %s86
      %p97 = scmp.eq.s32.totalorder %s33, 0
      %p98 = por %p96, %p97
      %p99 = scmp.ne.s32.totalorder %s85, %s86
      %p100 = scmp.eq.s32.totalorder %s34, 1
      %p101 = por %p99, %p100
      %p103 = scmp.ne.s32.totalorder %s86, %s102
      %p104 = scmp.eq.s32.totalorder %s34, 0
      %p105 = por %p103, %p104
      %s106 = ssub.s32 %s35, %s47
      %p107 = scmp.eq.s32.totalorder %s106, 0
      %s109 = sadd.s32 %s108, 1
      %s110 = scalar_select %p107, %s108, %s109
      %p113 = pneg %p107
      %p114 = scmp.eq.s32.totalorder %s28, 1
      %p115 = por %p113, %p114
      %p116 = scmp.ne.s32.totalorder %s108, %s111
      %p117 = scmp.eq.s32.totalorder %s28, 0
      %p118 = por %p116, %p117
      %p119 = scmp.ne.s32.totalorder %s108, %s111
      %p120 = scmp.eq.s32.totalorder %s33, 1
      %p121 = por %p119, %p120
      %p122 = scmp.ne.s32.totalorder %s111, %s112
      %p123 = scmp.eq.s32.totalorder %s33, 0
      %p124 = por %p122, %p123
      %p125 = scmp.ne.s32.totalorder %s111, %s112
      %p126 = scmp.eq.s32.totalorder %s34, 1
      %p127 = por %p125, %p126
      %p129 = scmp.ne.s32.totalorder %s112, %s128
      %p130 = scmp.eq.s32.totalorder %s34, 0
      %p131 = por %p129, %p130
      %s133 = sadd.s32 %s132, 1
      %p136 = scmp.eq.s32.totalorder %s28, 1
      %p137 = scmp.ne.s32.totalorder %s132, %s134
      %p138 = scmp.eq.s32.totalorder %s28, 0
      %p139 = por %p137, %p138
      %p140 = scmp.ne.s32.totalorder %s132, %s134
      %p141 = scmp.eq.s32.totalorder %s33, 1
      %p142 = por %p140, %p141
      %p143 = scmp.ne.s32.totalorder %s134, %s135
      %p144 = scmp.eq.s32.totalorder %s33, 0
      %p145 = por %p143, %p144
      %p146 = scmp.ne.s32.totalorder %s134, %s135
      %p147 = scmp.eq.s32.totalorder %s34, 1
      %p148 = por %p146, %p147
      %p150 = scmp.ne.s32.totalorder %s135, %s149
      %p151 = scmp.eq.s32.totalorder %s34, 0
      %p152 = por %p150, %p151
      %s154 = sadd.s32 %s153, 1
      %p157 = scmp.eq.s32.totalorder %s28, 1
      %p158 = scmp.ne.s32.totalorder %s153, %s155
      %p159 = scmp.eq.s32.totalorder %s28, 0
      %p160 = por %p158, %p159
      %p161 = scmp.ne.s32.totalorder %s153, %s155
      %p162 = scmp.eq.s32.totalorder %s33, 1
      %p163 = por %p161, %p162
      %p164 = scmp.ne.s32.totalorder %s155, %s156
      %p165 = scmp.eq.s32.totalorder %s33, 0
      %p166 = por %p164, %p165
      %p167 = scmp.ne.s32.totalorder %s155, %s156
      %p168 = scmp.eq.s32.totalorder %s34, 1
      %p169 = por %p167, %p168
      %p171 = scmp.ne.s32.totalorder %s156, %s170
      %p172 = scmp.eq.s32.totalorder %s34, 0
      %p173 = por %p171, %p172
      %s175 = sadd.s32 %s174, 1
      %p178 = scmp.eq.s32.totalorder %s28, 1
      %p179 = scmp.ne.s32.totalorder %s174, %s176
      %p180 = scmp.eq.s32.totalorder %s28, 0
      %p181 = por %p179, %p180
      %p182 = scmp.ne.s32.totalorder %s174, %s176
      %p183 = scmp.eq.s32.totalorder %s33, 1
      %p184 = por %p182, %p183
      %p185 = scmp.ne.s32.totalorder %s176, %s177
      %p186 = scmp.eq.s32.totalorder %s33, 0
      %p187 = por %p185, %p186
      %p188 = scmp.ne.s32.totalorder %s176, %s177
      %p189 = scmp.eq.s32.totalorder %s34, 1
      %p190 = por %p188, %p189
      %p192 = scmp.ne.s32.totalorder %s177, %s191
      %p193 = scmp.eq.s32.totalorder %s34, 0
      %p194 = por %p192, %p193
      %s196 = sadd.s32 %s195, 1
      %p199 = scmp.eq.s32.totalorder %s28, 1
      %p200 = scmp.ne.s32.totalorder %s195, %s197
      %p201 = scmp.eq.s32.totalorder %s28, 0
      %p202 = por %p200, %p201
      %p203 = scmp.ne.s32.totalorder %s195, %s197
      %p204 = scmp.eq.s32.totalorder %s33, 1
      %p205 = por %p203, %p204
      %p206 = scmp.ne.s32.totalorder %s197, %s198
      %p207 = scmp.eq.s32.totalorder %s33, 0
      %p208 = por %p206, %p207
      %p209 = scmp.ne.s32.totalorder %s197, %s198
      %p210 = scmp.eq.s32.totalorder %s34, 1
      %p211 = por %p209, %p210
      %p213 = scmp.ne.s32.totalorder %s198, %s212
      %p214 = scmp.eq.s32.totalorder %s34, 0
      %p215 = por %p213, %p214
      %s217 = sadd.s32 %s216, 1
      %p220 = scmp.eq.s32.totalorder %s28, 1
      %p221 = scmp.ne.s32.totalorder %s216, %s218
      %p222 = scmp.eq.s32.totalorder %s28, 0
      %p223 = por %p221, %p222
      %p224 = scmp.ne.s32.totalorder %s216, %s218
      %p225 = scmp.eq.s32.totalorder %s33, 1
      %p226 = por %p224, %p225
      %p227 = scmp.ne.s32.totalorder %s218, %s219
      %p228 = scmp.eq.s32.totalorder %s33, 0
      %p229 = por %p227, %p228
      %p230 = scmp.ne.s32.totalorder %s218, %s219
      %p231 = scmp.eq.s32.totalorder %s34, 1
      %p232 = por %p230, %p231
      %p234 = scmp.ne.s32.totalorder %s219, %s233
      %p235 = scmp.eq.s32.totalorder %s34, 0
      %p236 = por %p234, %p235
      %s238 = sadd.s32 %s237, 1
      %p241 = scmp.eq.s32.totalorder %s28, 1
      %p242 = scmp.ne.s32.totalorder %s237, %s239
      %p243 = scmp.eq.s32.totalorder %s28, 0
      %p244 = por %p242, %p243
      %p245 = scmp.ne.s32.totalorder %s237, %s239
      %p246 = scmp.eq.s32.totalorder %s33, 1
      %p247 = por %p245, %p246
      %p248 = scmp.ne.s32.totalorder %s239, %s240
      %p249 = scmp.eq.s32.totalorder %s33, 0
      %p250 = por %p248, %p249
      %p251 = scmp.ne.s32.totalorder %s239, %s240
      %p252 = scmp.eq.s32.totalorder %s34, 1
      %p253 = por %p251, %p252
      %p255 = scmp.ne.s32.totalorder %s240, %s254
      %p256 = scmp.eq.s32.totalorder %s34, 0
      %p257 = por %p255, %p256
      %s259 = sadd.s32 %s258, 1
      %p262 = scmp.eq.s32.totalorder %s28, 1
      %p263 = scmp.ne.s32.totalorder %s258, %s260
      %p264 = scmp.eq.s32.totalorder %s28, 0
      %p265 = por %p263, %p264
      %p266 = scmp.ne.s32.totalorder %s258, %s260
      %p267 = scmp.eq.s32.totalorder %s33, 1
      %p268 = por %p266, %p267
      %p269 = scmp.ne.s32.totalorder %s260, %s261
      %p270 = scmp.eq.s32.totalorder %s33, 0
      %p271 = por %p269, %p270
      %p272 = scmp.ne.s32.totalorder %s260, %s261
      %p273 = scmp.eq.s32.totalorder %s34, 1
      %p274 = por %p272, %p273
      %p276 = scmp.ne.s32.totalorder %s261, %s275
      %p277 = scmp.eq.s32.totalorder %s34, 0
      %p278 = por %p276, %p277
      %s280 = sadd.s32 %s279, 1
      %p283 = scmp.eq.s32.totalorder %s28, 1
      %p284 = scmp.ne.s32.totalorder %s279, %s281
      %p285 = scmp.eq.s32.totalorder %s28, 0
      %p286 = por %p284, %p285
      %p287 = scmp.ne.s32.totalorder %s279, %s281
      %p288 = scmp.eq.s32.totalorder %s33, 1
      %p289 = por %p287, %p288
      %p290 = scmp.ne.s32.totalorder %s281, %s282
      %p291 = scmp.eq.s32.totalorder %s33, 0
      %p292 = por %p290, %p291
      %p293 = scmp.ne.s32.totalorder %s281, %s282
      %p294 = scmp.eq.s32.totalorder %s34, 1
      %p295 = por %p293, %p294
      %p297 = scmp.ne.s32.totalorder %s282, %s296
      %p298 = scmp.eq.s32.totalorder %s34, 0
      %p299 = por %p297, %p298
      %s300 = ssub.s32 %s35, %s47
      %p301 = scmp.eq.s32.totalorder %s300, 0
      %s303 = sadd.s32 %s302, 1
      %s304 = scalar_select %p301, %s302, %s303
      %p307 = pneg %p301
      %p308 = scmp.eq.s32.totalorder %s28, 1
      %p309 = por %p307, %p308
      %p310 = scmp.ne.s32.totalorder %s302, %s305
      %p311 = scmp.eq.s32.totalorder %s28, 0
      %p312 = por %p310, %p311
      %p313 = scmp.ne.s32.totalorder %s302, %s305
      %p314 = scmp.eq.s32.totalorder %s33, 1
      %p315 = por %p313, %p314
      %p316 = scmp.ne.s32.totalorder %s305, %s306
      %p317 = scmp.eq.s32.totalorder %s33, 0
      %p318 = por %p316, %p317
      %p319 = scmp.ne.s32.totalorder %s305, %s306
      %p320 = scmp.eq.s32.totalorder %s34, 1
      %p321 = por %p319, %p320
      %p323 = scmp.ne.s32.totalorder %s306, %s322
      %p324 = scmp.eq.s32.totalorder %s34, 0
      %p325 = por %p323, %p324
      %p326 = scmp.le.s32.totalorder 1, %s28
      %p327 = scmp.lt.s32.totalorder %s28, 3
      %p328 = pnand %p326, %p327
      %p329 = pneg %p328
      // Predicated region
      $region9: #{tpu_custom_call.1} parent=5 // pred_check
        _
      $region10: #{tpu_custom_call.1} parent=5 // pred_check_branch
        %331 = sbr.rel (%p328) target = $region12
      $region11: #{tpu_custom_call.1} parent=5 // pred_region
        %s332 = ssub.s32 %s28, 1
        // Predicated region
        $region13: #{tpu_custom_call.1} parent=11 // pred_check
          %p333 = pneg %p124
        $region14: #{tpu_custom_call.1} parent=11 // pred_check_branch
          %335 = sbr.rel (%p333) target = $region16
        $region15: #{tpu_custom_call.1} parent=11 // pred_region
          %s337 = ssub.s32 128, 128
          %338 = vsyncadd [#allocation12], %s337
          %s339 = smul.addr %s37, 128
          %s340 = scalar_lea.hbm %s2, %s339
          %s342 = sshll.u32 [#allocation13], 4
          %s343 = int_to_ptr.vmem [resolvable:$true] %s342
          %345 = dma.hbm_to_vmem [thread:$0]  %s340, 128, %s343, [#allocation12]
        $region16: #{tpu_custom_call.1} parent=11 // pred_fallthru
          _
        // Predicated region
        $region17: #{tpu_custom_call.1} parent=11 // pred_check
          %p346 = pneg %p145
        $region18: #{tpu_custom_call.1} parent=11 // pred_check_branch
          %348 = sbr.rel (%p346) target = $region20
        $region19: #{tpu_custom_call.1} parent=11 // pred_region
          %s350 = ssub.s32 2048, 2048
          %351 = vsyncadd [#allocation15], %s350
          %s352 = sshll.u32 [#allocation14], 4
          %s353 = int_to_ptr.vmem [resolvable:$true] %s352
          %358 = dma.hbm_to_vmem [thread:$0]  %s3, 2048, %s353, [#allocation15], 128, 128, 8
        $region20: #{tpu_custom_call.1} parent=11 // pred_fallthru
          _
        // Predicated region
        $region21: #{tpu_custom_call.1} parent=11 // pred_check
          %p359 = pneg %p166
        $region22: #{tpu_custom_call.1} parent=11 // pred_check_branch
          %361 = sbr.rel (%p359) target = $region24
        $region23: #{tpu_custom_call.1} parent=11 // pred_region
          %s363 = ssub.s32 512, 512
          %364 = vsyncadd [#allocation15], %s363
          %s365 = sshll.u32 [#allocation16], 4
          %s366 = int_to_ptr.vmem [resolvable:$true] %s365
          %371 = dma.hbm_to_vmem [thread:$0]  %s4, 512, %s366, [#allocation15], 128, 128, 8
        $region24: #{tpu_custom_call.1} parent=11 // pred_fallthru
          _
        // Predicated region
        $region25: #{tpu_custom_call.1} parent=11 // pred_check
          %p372 = pneg %p187
        $region26: #{tpu_custom_call.1} parent=11 // pred_check_branch
          %374 = sbr.rel (%p372) target = $region28
        $region27: #{tpu_custom_call.1} parent=11 // pred_region
          %s376 = ssub.s32 16, 16
          %377 = vsyncadd [#allocation18], %s376
          %s379 = sshll.u32 [#allocation17], 4
          %s380 = int_to_ptr.vmem [resolvable:$true] %s379
          %382 = dma.hbm_to_vmem [thread:$0]  %s5, 16, %s380, [#allocation18]
        $region28: #{tpu_custom_call.1} parent=11 // pred_fallthru
          _
        // Predicated region
        $region29: #{tpu_custom_call.1} parent=11 // pred_check
          %p383 = pneg %p208
        $region30: #{tpu_custom_call.1} parent=11 // pred_check_branch
          %385 = sbr.rel (%p383) target = $region32
        $region31: #{tpu_custom_call.1} parent=11 // pred_region
          %s387 = ssub.s32 2048, 2048
          %388 = vsyncadd [#allocation18], %s387
          %s389 = sshll.u32 [#allocation19], 4
          %s390 = int_to_ptr.vmem [resolvable:$true] %s389
          %395 = dma.hbm_to_vmem [thread:$0]  %s6, 2048, %s390, [#allocation18], 128, 128, 8
        $region32: #{tpu_custom_call.1} parent=11 // pred_fallthru
          _
        // Predicated region
        $region33: #{tpu_custom_call.1} parent=11 // pred_check
          %p396 = pneg %p229
        $region34: #{tpu_custom_call.1} parent=11 // pred_check_branch
          %398 = sbr.rel (%p396) target = $region36
        $region35: #{tpu_custom_call.1} parent=11 // pred_region
          %s400 = ssub.s32 512, 512
          %401 = vsyncadd [#allocation21], %s400
          %s402 = sshll.u32 [#allocation20], 4
          %s403 = int_to_ptr.vmem [resolvable:$true] %s402
          %408 = dma.hbm_to_vmem [thread:$0]  %s7, 512, %s403, [#allocation21], 128, 128, 8
        $region36: #{tpu_custom_call.1} parent=11 // pred_fallthru
          _
        // Predicated region
        $region37: #{tpu_custom_call.1} parent=11 // pred_check
          %p409 = pneg %p250
        $region38: #{tpu_custom_call.1} parent=11 // pred_check_branch
          %411 = sbr.rel (%p409) target = $region40
        $region39: #{tpu_custom_call.1} parent=11 // pred_region
          %s413 = ssub.s32 16, 16
          %414 = vsyncadd [#allocation21], %s413
          %s416 = sshll.u32 [#allocation22], 4
          %s417 = int_to_ptr.vmem [resolvable:$true] %s416
          %419 = dma.hbm_to_vmem [thread:$0]  %s8, 16, %s417, [#allocation21]
        $region40: #{tpu_custom_call.1} parent=11 // pred_fallthru
          _
        // Predicated region
        $region41: #{tpu_custom_call.1} parent=11 // pred_check
          %p420 = pneg %p271
        $region42: #{tpu_custom_call.1} parent=11 // pred_check_branch
          %422 = sbr.rel (%p420) target = $region44
        $region43: #{tpu_custom_call.1} parent=11 // pred_region
          %s424 = ssub.s32 1024, 1024
          %425 = vsyncadd [#allocation24], %s424
          %s426 = sshll.u32 [#allocation23], 4
          %s427 = int_to_ptr.vmem [resolvable:$true] %s426
          %432 = dma.hbm_to_vmem [thread:$0]  %s9, 1024, %s427, [#allocation24], 128, 128, 8
        $region44: #{tpu_custom_call.1} parent=11 // pred_fallthru
          _
        // Predicated region
        $region45: #{tpu_custom_call.1} parent=11 // pred_check
          %p433 = pneg %p292
        $region46: #{tpu_custom_call.1} parent=11 // pred_check_branch
          %435 = sbr.rel (%p433) target = $region48
        $region47: #{tpu_custom_call.1} parent=11 // pred_region
          %s437 = ssub.s32 16, 16
          %438 = vsyncadd [#allocation24], %s437
          %s440 = sshll.u32 [#allocation25], 4
          %s441 = int_to_ptr.vmem [resolvable:$true] %s440
          %443 = dma.hbm_to_vmem [thread:$0]  %s10, 16, %s441, [#allocation24]
        $region48: #{tpu_custom_call.1} parent=11 // pred_fallthru
          _
      $region12: #{tpu_custom_call.1} parent=5 // pred_fallthru
        _
      %p444 = scmp.lt.s32.totalorder %s28, 2
      // Predicated region
      $region49: #{tpu_custom_call.1} parent=5 // pred_check
        %p445 = pneg %p444
      $region50: #{tpu_custom_call.1} parent=5 // pred_check_branch
        %447 = sbr.rel (%p445) target = $region52
      $region51: #{tpu_custom_call.1} parent=5 // pred_region
        // Predicated region
        $region53: #{tpu_custom_call.1} parent=51 // pred_check
          %p448 = pneg %p62
        $region54: #{tpu_custom_call.1} parent=51 // pred_check_branch
          %450 = sbr.rel (%p448) target = $region56
        $region55: #{tpu_custom_call.1} parent=51 // pred_region
          %s451 = sand.u32 %s52, 1
          %s452 = scalar_lea.sflag [#allocation9], %s451
          %s453 = sand.u32 %s52, 1
          %s454 = smul.addr %s453, 32
          %s455 = scalar_lea.vmem [#allocation8], %s454
          %s456 = smul.u32 4, %s36
          %s458 = ssub.s32 512, 512
          %459 = vsyncadd %s452, %s458
          %s460 = sadd.s32 %s35, %s456
          %s461 = smul.addr %s460, 128
          %s462 = scalar_lea.hbm %s0, %s461
          %s463 = sshll.u32 %s455, 4
          %s464 = int_to_ptr.vmem [resolvable:$true] %s463
          %469 = dma.hbm_to_vmem [thread:$0]  %s462, 512, %s464, %s452, 128, 128, 8
        $region56: #{tpu_custom_call.1} parent=51 // pred_fallthru
          _
        // Predicated region
        $region57: #{tpu_custom_call.1} parent=51 // pred_check
          %p470 = pneg %p92
        $region58: #{tpu_custom_call.1} parent=51 // pred_check_branch
          %472 = sbr.rel (%p470) target = $region60
        $region59: #{tpu_custom_call.1} parent=51 // pred_region
          %s473 = sand.u32 %s28, 1
          %s474 = scalar_lea.sflag [#allocation12], %s473
          %s475 = sand.u32 %s82, 1
          %s476 = smul.addr %s475, 32
          %s477 = scalar_lea.vmem [#allocation11], %s476
          %s478 = ssub.s32 1, %s36
          %s479 = smul.u32 4, %s478
          %s481 = ssub.s32 512, 512
          %482 = vsyncadd %s474, %s481
          %s483 = sadd.s32 %s35, %s479
          %s484 = smul.addr %s483, 128
          %s485 = scalar_lea.hbm %s1, %s484
          %s486 = sshll.u32 %s477, 4
          %s487 = int_to_ptr.vmem [resolvable:$true] %s486
          %492 = dma.hbm_to_vmem [thread:$0]  %s485, 512, %s487, %s474, 128, 128, 8
        $region60: #{tpu_custom_call.1} parent=51 // pred_fallthru
          _
      $region52: #{tpu_custom_call.1} parent=5 // pred_fallthru
        _
      %p493 = scmp.le.s32.totalorder 1, %s28
      %p494 = scmp.lt.s32.totalorder %s28, 3
      %p495 = pnand %p493, %p494
      %p496 = pneg %p495
      // Predicated region
      $region61: #{tpu_custom_call.1} parent=5 // pred_check
        _
      $region62: #{tpu_custom_call.1} parent=5 // pred_check_branch
        %498 = sbr.rel (%p495) target = $region64
      $region63: #{tpu_custom_call.1} parent=5 // pred_region
        %s499 = ssub.s32 %s28, 1
        %s500 = sand.u32 %s55, 1
        %s501 = scalar_lea.sflag [#allocation9], %s500
        %s502 = sand.u32 %s55, 1
        %s503 = smul.addr %s502, 32
        %s504 = scalar_lea.vmem [#allocation8], %s503
        // Predicated region
        $region65: #{tpu_custom_call.1} parent=63 // pred_check
          %p505 = pneg %p68
        $region66: #{tpu_custom_call.1} parent=63 // pred_check_branch
          %507 = sbr.rel (%p505) target = $region68
        $region67: #{tpu_custom_call.1} parent=63 // pred_region
          %508 = dma.done %s501, 512
        $region68: #{tpu_custom_call.1} parent=63 // pred_fallthru
          _
        %s509 = sand.u32 %s33, 1
        %s510 = scalar_lea.sflag [#allocation12], %s509
        %s511 = sand.u32 %s85, 1
        %s512 = smul.addr %s511, 32
        %s513 = scalar_lea.vmem [#allocation11], %s512
        // Predicated region
        $region69: #{tpu_custom_call.1} parent=63 // pred_check
          %p514 = pneg %p98
        $region70: #{tpu_custom_call.1} parent=63 // pred_check_branch
          %516 = sbr.rel (%p514) target = $region72
        $region71: #{tpu_custom_call.1} parent=63 // pred_region
          %517 = dma.done %s510, 512
        $region72: #{tpu_custom_call.1} parent=63 // pred_fallthru
          _
        // Predicated region
        $region73: #{tpu_custom_call.1} parent=63 // pred_check
          %p518 = pneg %p124
        $region74: #{tpu_custom_call.1} parent=63 // pred_check_branch
          %520 = sbr.rel (%p518) target = $region76
        $region75: #{tpu_custom_call.1} parent=63 // pred_region
          %521 = dma.done [#allocation12], 128
        $region76: #{tpu_custom_call.1} parent=63 // pred_fallthru
          _
        // Predicated region
        $region77: #{tpu_custom_call.1} parent=63 // pred_check
          %p522 = pneg %p145
        $region78: #{tpu_custom_call.1} parent=63 // pred_check_branch
          %524 = sbr.rel (%p522) target = $region80
        $region79: #{tpu_custom_call.1} parent=63 // pred_region
          %525 = dma.done [#allocation15], 2048
        $region80: #{tpu_custom_call.1} parent=63 // pred_fallthru
          _
        // Predicated region
        $region81: #{tpu_custom_call.1} parent=63 // pred_check
          %p526 = pneg %p166
        $region82: #{tpu_custom_call.1} parent=63 // pred_check_branch
          %528 = sbr.rel (%p526) target = $region84
        $region83: #{tpu_custom_call.1} parent=63 // pred_region
          %529 = dma.done [#allocation15], 512
        $region84: #{tpu_custom_call.1} parent=63 // pred_fallthru
          _
        // Predicated region
        $region85: #{tpu_custom_call.1} parent=63 // pred_check
          %p530 = pneg %p187
        $region86: #{tpu_custom_call.1} parent=63 // pred_check_branch
          %532 = sbr.rel (%p530) target = $region88
        $region87: #{tpu_custom_call.1} parent=63 // pred_region
          %533 = dma.done [#allocation18], 16
        $region88: #{tpu_custom_call.1} parent=63 // pred_fallthru
          _
        // Predicated region
        $region89: #{tpu_custom_call.1} parent=63 // pred_check
          %p534 = pneg %p208
        $region90: #{tpu_custom_call.1} parent=63 // pred_check_branch
          %536 = sbr.rel (%p534) target = $region92
        $region91: #{tpu_custom_call.1} parent=63 // pred_region
          %537 = dma.done [#allocation18], 2048
        $region92: #{tpu_custom_call.1} parent=63 // pred_fallthru
          _
        // Predicated region
        $region93: #{tpu_custom_call.1} parent=63 // pred_check
          %p538 = pneg %p229
        $region94: #{tpu_custom_call.1} parent=63 // pred_check_branch
          %540 = sbr.rel (%p538) target = $region96
        $region95: #{tpu_custom_call.1} parent=63 // pred_region
          %541 = dma.done [#allocation21], 512
        $region96: #{tpu_custom_call.1} parent=63 // pred_fallthru
          _
        // Predicated region
        $region97: #{tpu_custom_call.1} parent=63 // pred_check
          %p542 = pneg %p250
        $region98: #{tpu_custom_call.1} parent=63 // pred_check_branch
          %544 = sbr.rel (%p542) target = $region100
        $region99: #{tpu_custom_call.1} parent=63 // pred_region
          %545 = dma.done [#allocation21], 16
        $region100: #{tpu_custom_call.1} parent=63 // pred_fallthru
          _
        // Predicated region
        $region101: #{tpu_custom_call.1} parent=63 // pred_check
          %p546 = pneg %p271
        $region102: #{tpu_custom_call.1} parent=63 // pred_check_branch
          %548 = sbr.rel (%p546) target = $region104
        $region103: #{tpu_custom_call.1} parent=63 // pred_region
          %549 = dma.done [#allocation24], 1024
        $region104: #{tpu_custom_call.1} parent=63 // pred_fallthru
          _
        // Predicated region
        $region105: #{tpu_custom_call.1} parent=63 // pred_check
          %p550 = pneg %p292
        $region106: #{tpu_custom_call.1} parent=63 // pred_check_branch
          %552 = sbr.rel (%p550) target = $region108
        $region107: #{tpu_custom_call.1} parent=63 // pred_region
          %553 = dma.done [#allocation24], 16
        $region108: #{tpu_custom_call.1} parent=63 // pred_fallthru
          _
        %s554 = sand.u32 %s55, 1
        %s555 = scalar_lea.sflag [#allocation9], %s554
        %s556 = sand.u32 %s55, 1
        %s557 = smul.addr %s556, 32
        %s558 = scalar_lea.vmem [#allocation8], %s557
        %p559 = pneg %p68
        %p560 = pneg %p65
        %s561 = sand.u32 %s33, 1
        %s562 = scalar_lea.sflag [#allocation12], %s561
        %s563 = sand.u32 %s85, 1
        %s564 = smul.addr %s563, 32
        %s565 = scalar_lea.vmem [#allocation11], %s564
        %p566 = pneg %p98
        %p567 = pneg %p95
        %p568 = pneg %p124
        %p569 = pneg %p121
        %p570 = pneg %p145
        %p571 = pneg %p142
        %p572 = pneg %p166
        %p573 = pneg %p163
        %p574 = pneg %p187
        %p575 = pneg %p184
        %p576 = pneg %p208
        %p577 = pneg %p205
        %p578 = pneg %p229
        %p579 = pneg %p226
        %p580 = pneg %p250
        %p581 = pneg %p247
        %p582 = pneg %p271
        %p583 = pneg %p268
        %p584 = pneg %p292
        %p585 = pneg %p289
        %p586 = pneg %p318
        %p587 = pneg %p315
        %s588 = smul.u32 4, %s38
        %s589 = ssub.s32 1, %s38
        %s590 = smul.u32 4, %s589
        %p591 = scmp.eq.s32.totalorder %s38, 0
        // Predicated region
        $region109: #{tpu_custom_call.1} parent=63 // pred_check
          %p592 = pneg %p591
        $region110: #{tpu_custom_call.1} parent=63 // pred_check_branch
          %594 = sbr.rel (%p592) target = $region112
        $region111: #{tpu_custom_call.1} parent=63 // pred_region
          %vm595 = vcmask 261120
          %596 = vst.msk [vmem:[#allocation2] sm:$0xff] %vm595, 0.0
          %597 = vst.msk [vmem:[#allocation3] sm:$0xff] %vm595, 0.0
          %598 = vst.msk [vmem:[#allocation4] sm:$0xff] %vm595, 0.0
          %599 = vst.msk [vmem:[#allocation5] sm:$0xff] %vm595, 0.0
        $region112: #{tpu_custom_call.1} parent=63 // pred_fallthru
          _
        %v600 = vld [vmem:[%s504] sm:$0xff]
        %v601 = vld [vmem:[%s504 + $0x8] sm:$0xff]
        %v602 = vld [vmem:[%s504 + $0x10] sm:$0xff]
        %v603 = vld [vmem:[%s504 + $0x18] sm:$0xff]
        %v604 = vld [vmem:[%s513] sm:$0xff]
        %v605 = vld [vmem:[%s513 + $0x8] sm:$0xff]
        %v606 = vld [vmem:[%s513 + $0x10] sm:$0xff]
        %v607 = vld [vmem:[%s513 + $0x18] sm:$0xff]
        %v608 = vld [vmem:[#allocation14] sm:$0xff]
        %v609 = vld [vmem:[#allocation14 + $0x8] sm:$0xff]
        %v610 = vld [vmem:[#allocation14 + $0x10] sm:$0xff]
        %v611 = vld [vmem:[#allocation14 + $0x18] sm:$0xff]
        %v612 = vld [vmem:[#allocation14 + $0x20] sm:$0xff]
        %v613 = vld [vmem:[#allocation14 + $0x28] sm:$0xff]
        %v614 = vld [vmem:[#allocation14 + $0x30] sm:$0xff]
        %v615 = vld [vmem:[#allocation14 + $0x38] sm:$0xff]
        %v616 = vld [vmem:[#allocation14 + $0x40] sm:$0xff]
        %v617 = vld [vmem:[#allocation14 + $0x48] sm:$0xff]
        %v618 = vld [vmem:[#allocation14 + $0x50] sm:$0xff]
        %v619 = vld [vmem:[#allocation14 + $0x58] sm:$0xff]
        %v620 = vld [vmem:[#allocation14 + $0x60] sm:$0xff]
        %v621 = vld [vmem:[#allocation14 + $0x68] sm:$0xff]
        %v622 = vld [vmem:[#allocation14 + $0x70] sm:$0xff]
        %v623 = vld [vmem:[#allocation14 + $0x78] sm:$0xff]
        %v624 = vld [vmem:[#allocation17] sm:$0x1]
        %v626 = vlaneseq
        %v627 = vshrl.u32 %v626, 7
        %v628 = vsub.s32 0, %v627
        %v629 = vrot.slane %v624, %v628
        %631 = vmatprep.subr.mxu0 0.0
        %632 = vmatpush1.msra.mxu0 %v608
        %633 = vmatprep.subr.mxu0 0.0
        %634 = vmatpush1.msra.mxu0 %v609
        %635 = vmatprep.subr.mxu0 0.0
        %636 = vmatpush1.msra.mxu0 %v610
        %637 = vmatprep.subr.mxu0 0.0
        %638 = vmatpush1.msra.mxu0 %v611
        %639 = vmatprep.subr.mxu0 0.0
        %640 = vmatpush1.msra.mxu0 %v612
        %641 = vmatprep.subr.mxu0 0.0
        %642 = vmatpush1.msra.mxu0 %v613
        %643 = vmatprep.subr.mxu0 0.0
        %644 = vmatpush1.msra.mxu0 %v614
        %645 = vmatprep.subr.mxu0 0.0
        %646 = vmatpush1.msra.mxu0 %v615
        %647 = vmatprep.subr.mxu0 0.0
        %648 = vmatpush1.msra.mxu0 %v616
        %649 = vmatprep.subr.mxu0 0.0
        %650 = vmatpush1.msra.mxu0 %v617
        %651 = vmatprep.subr.mxu0 0.0
        %652 = vmatpush1.msra.mxu0 %v618
        %653 = vmatprep.subr.mxu0 0.0
        %654 = vmatpush1.msra.mxu0 %v619
        %655 = vmatprep.subr.mxu0 0.0
        %656 = vmatpush1.msra.mxu0 %v620
        %657 = vmatprep.subr.mxu0 0.0
        %658 = vmatpush1.msra.mxu0 %v621
        %659 = vmatprep.subr.mxu0 0.0
        %660 = vmatpush1.msra.mxu0 %v622
        %661 = vmatprep.subr.mxu0 0.0
        %662 = vmatpush1.msra.mxu0 %v623
        %663 = vmatprep.subr.mxu0 0.0
        %664 = vmatpush1.msra.mxu0 0.0
        %665 = vmatprep.subr.mxu0 0.0
        %666 = vmatpush1.msra.mxu0 0.0
        %667 = vmatprep.subr.mxu0 0.0
        %668 = vmatpush1.msra.mxu0 0.0
        %669 = vmatprep.subr.mxu0 0.0
        %670 = vmatpush1.msra.mxu0 0.0
        %671 = vmatprep.subr.mxu0 0.0
        %672 = vmatpush1.msra.mxu0 0.0
        %673 = vmatprep.subr.mxu0 0.0
        %674 = vmatpush1.msra.mxu0 0.0
        %675 = vmatprep.subr.mxu0 0.0
        %676 = vmatpush1.msra.mxu0 0.0
        %677 = vmatprep.subr.mxu0 0.0
        %678 = vmatpush1.msra.mxu0 0.0
        %679 = vmatprep.subr.mxu0 0.0
        %680 = vmatpush1.msra.mxu0 0.0
        %681 = vmatprep.subr.mxu0 0.0
        %682 = vmatpush1.msra.mxu0 0.0
        %683 = vmatprep.subr.mxu0 0.0
        %684 = vmatpush1.msra.mxu0 0.0
        %685 = vmatprep.subr.mxu0 0.0
        %686 = vmatpush1.msra.mxu0 0.0
        %687 = vmatprep.subr.mxu0 0.0
        %688 = vmatpush1.msra.mxu0 0.0
        %689 = vmatprep.subr.mxu0 0.0
        %690 = vmatpush1.msra.mxu0 0.0
        %691 = vmatprep.subr.mxu0 0.0
        %692 = vmatpush1.msra.mxu0 0.0
        %693 = vmatprep.subr.mxu0 0.0
        %694 = vmatpush1.msra.mxu0 0.0
        %695 = vmatprep.mubr.f32.mxu0 0.0
        %696 = vmatmul.mubr.f32.gmra.mrb[0].mxu0 %v600
        %v697 = vpop.f32.mrb[0].mxu0
        %v698 = vadd.f32 %v629, %v697
        %v699 = vpop.f32.mrb[0].mxu0
        %700 = vmatprep.mubr.f32.mxu0 0.0
        %701 = vmatmul.mubr.f32.gmra.mrb[0].mxu0 %v601
        %v702 = vpop.f32.mrb[0].mxu0
        %v703 = vadd.f32 %v629, %v702
        %v704 = vpop.f32.mrb[0].mxu0
        %705 = vmatprep.mubr.f32.mxu0 0.0
        %706 = vmatmul.mubr.f32.gmra.mrb[0].mxu0 %v602
        %v707 = vpop.f32.mrb[0].mxu0
        %v708 = vadd.f32 %v629, %v707
        %v709 = vpop.f32.mrb[0].mxu0
        %710 = vmatprep.mubr.f32.mxu0 0.0
        %711 = vmatmul.mubr.f32.gmra.mrb[0].mxu0 %v603
        %v712 = vpop.f32.mrb[0].mxu0
        %v713 = vadd.f32 %v629, %v712
        %v714 = vpop.f32.mrb[0].mxu0
        %715 = vdwg.mxu0
        %716 = vst [vmem:[#allocation6] sm:$0xff] %v698
        %717 = vst [vmem:[#allocation6 + $0x8] sm:$0xff] %v703
        %718 = vst [vmem:[#allocation6 + $0x10] sm:$0xff] %v708
        %719 = vst [vmem:[#allocation6 + $0x18] sm:$0xff] %v713
        %v720 = vld [vmem:[#allocation19] sm:$0xff]
        %v721 = vld [vmem:[#allocation19 + $0x8] sm:$0xff]
        %v722 = vld [vmem:[#allocation19 + $0x10] sm:$0xff]
        %v723 = vld [vmem:[#allocation19 + $0x18] sm:$0xff]
        %v724 = vld [vmem:[#allocation19 + $0x20] sm:$0xff]
        %v725 = vld [vmem:[#allocation19 + $0x28] sm:$0xff]
        %v726 = vld [vmem:[#allocation19 + $0x30] sm:$0xff]
        %v727 = vld [vmem:[#allocation19 + $0x38] sm:$0xff]
        %v728 = vld [vmem:[#allocation19 + $0x40] sm:$0xff]
        %v729 = vld [vmem:[#allocation19 + $0x48] sm:$0xff]
        %v730 = vld [vmem:[#allocation19 + $0x50] sm:$0xff]
        %v731 = vld [vmem:[#allocation19 + $0x58] sm:$0xff]
        %v732 = vld [vmem:[#allocation19 + $0x60] sm:$0xff]
        %v733 = vld [vmem:[#allocation19 + $0x68] sm:$0xff]
        %v734 = vld [vmem:[#allocation19 + $0x70] sm:$0xff]
        %v735 = vld [vmem:[#allocation19 + $0x78] sm:$0xff]
        %v736 = vld [vmem:[#allocation22] sm:$0x1]
        %v738 = vlaneseq
        %v739 = vshrl.u32 %v738, 7
        %v740 = vsub.s32 0, %v739
        %v741 = vrot.slane %v736, %v740
        %743 = vmatprep.subr.mxu0 0.0
        %744 = vmatpush1.msra.mxu0 %v720
        %745 = vmatprep.subr.mxu0 0.0
        %746 = vmatpush1.msra.mxu0 %v721
        %747 = vmatprep.subr.mxu0 0.0
        %748 = vmatpush1.msra.mxu0 %v722
        %749 = vmatprep.subr.mxu0 0.0
        %750 = vmatpush1.msra.mxu0 %v723
        %751 = vmatprep.subr.mxu0 0.0
        %752 = vmatpush1.msra.mxu0 %v724
        %753 = vmatprep.subr.mxu0 0.0
        %754 = vmatpush1.msra.mxu0 %v725
        %755 = vmatprep.subr.mxu0 0.0
        %756 = vmatpush1.msra.mxu0 %v726
        %757 = vmatprep.subr.mxu0 0.0
        %758 = vmatpush1.msra.mxu0 %v727
        %759 = vmatprep.subr.mxu0 0.0
        %760 = vmatpush1.msra.mxu0 %v728
        %761 = vmatprep.subr.mxu0 0.0
        %762 = vmatpush1.msra.mxu0 %v729
        %763 = vmatprep.subr.mxu0 0.0
        %764 = vmatpush1.msra.mxu0 %v730
        %765 = vmatprep.subr.mxu0 0.0
        %766 = vmatpush1.msra.mxu0 %v731
        %767 = vmatprep.subr.mxu0 0.0
        %768 = vmatpush1.msra.mxu0 %v732
        %769 = vmatprep.subr.mxu0 0.0
        %770 = vmatpush1.msra.mxu0 %v733
        %771 = vmatprep.subr.mxu0 0.0
        %772 = vmatpush1.msra.mxu0 %v734
        %773 = vmatprep.subr.mxu0 0.0
        %774 = vmatpush1.msra.mxu0 %v735
        %775 = vmatprep.subr.mxu0 0.0
        %776 = vmatpush1.msra.mxu0 0.0
        %777 = vmatprep.subr.mxu0 0.0
        %778 = vmatpush1.msra.mxu0 0.0
        %779 = vmatprep.subr.mxu0 0.0
        %780 = vmatpush1.msra.mxu0 0.0
        %781 = vmatprep.subr.mxu0 0.0
        %782 = vmatpush1.msra.mxu0 0.0
        %783 = vmatprep.subr.mxu0 0.0
        %784 = vmatpush1.msra.mxu0 0.0
        %785 = vmatprep.subr.mxu0 0.0
        %786 = vmatpush1.msra.mxu0 0.0
        %787 = vmatprep.subr.mxu0 0.0
        %788 = vmatpush1.msra.mxu0 0.0
        %789 = vmatprep.subr.mxu0 0.0
        %790 = vmatpush1.msra.mxu0 0.0
        %791 = vmatprep.subr.mxu0 0.0
        %792 = vmatpush1.msra.mxu0 0.0
        %793 = vmatprep.subr.mxu0 0.0
        %794 = vmatpush1.msra.mxu0 0.0
        %795 = vmatprep.subr.mxu0 0.0
        %796 = vmatpush1.msra.mxu0 0.0
        %797 = vmatprep.subr.mxu0 0.0
        %798 = vmatpush1.msra.mxu0 0.0
        %799 = vmatprep.subr.mxu0 0.0
        %800 = vmatpush1.msra.mxu0 0.0
        %801 = vmatprep.subr.mxu0 0.0
        %802 = vmatpush1.msra.mxu0 0.0
        %803 = vmatprep.subr.mxu0 0.0
        %804 = vmatpush1.msra.mxu0 0.0
        %805 = vmatprep.subr.mxu0 0.0
        %806 = vmatpush1.msra.mxu0 0.0
        %807 = vmatprep.mubr.f32.mxu0 0.0
        %808 = vmatmul.mubr.f32.gmra.mrb[0].mxu0 %v604
        %v809 = vpop.f32.mrb[0].mxu0
        %v810 = vadd.f32 %v741, %v809
        %v811 = vpop.f32.mrb[0].mxu0
        %812 = vmatprep.mubr.f32.mxu0 0.0
        %813 = vmatmul.mubr.f32.gmra.mrb[0].mxu0 %v605
        %v814 = vpop.f32.mrb[0].mxu0
        %v815 = vadd.f32 %v741, %v814
        %v816 = vpop.f32.mrb[0].mxu0
        %817 = vmatprep.mubr.f32.mxu0 0.0
        %818 = vmatmul.mubr.f32.gmra.mrb[0].mxu0 %v606
        %v819 = vpop.f32.mrb[0].mxu0
        %v820 = vadd.f32 %v741, %v819
        %v821 = vpop.f32.mrb[0].mxu0
        %822 = vmatprep.mubr.f32.mxu0 0.0
        %823 = vmatmul.mubr.f32.gmra.mrb[0].mxu0 %v607
        %v824 = vpop.f32.mrb[0].mxu0
        %v825 = vadd.f32 %v741, %v824
        %v826 = vpop.f32.mrb[0].mxu0
        %827 = vdwg.mxu0
        %828 = vst [vmem:[#allocation7] sm:$0xff] %v810
        %829 = vst [vmem:[#allocation7 + $0x8] sm:$0xff] %v815
        %830 = vst [vmem:[#allocation7 + $0x10] sm:$0xff] %v820
        %831 = vst [vmem:[#allocation7 + $0x18] sm:$0xff] %v825
        %v832 = vld [vmem:[#allocation13] sm:$0xff]
        %v833 = vld [vmem:[#allocation16] sm:$0xff]
        %v834 = vld [vmem:[#allocation16 + $0x8] sm:$0xff]
        %v835 = vld [vmem:[#allocation16 + $0x10] sm:$0xff]
        %v836 = vld [vmem:[#allocation16 + $0x18] sm:$0xff]
        %v837 = vld [vmem:[#allocation20] sm:$0xff]
        %v838 = vld [vmem:[#allocation20 + $0x8] sm:$0xff]
        %v839 = vld [vmem:[#allocation20 + $0x10] sm:$0xff]
        %v840 = vld [vmem:[#allocation20 + $0x18] sm:$0xff]
        %v841 = vld [vmem:[#allocation2] sm:$0xff]
        %v842 = vld [vmem:[#allocation3] sm:$0xff]
        %v843 = vld [vmem:[#allocation4] sm:$0xff]
        %v844 = vld [vmem:[#allocation5] sm:$0xff]
        %s845 = smul.u32 %s38, 4
        %s846 = ssub.s32 7, %s845
        %v847 = vld [vmem:[#allocation6] sm:$0xff]
        %vm848 = vcmask 261120
        %v850 = vsel %vm848, %v841, 0
        %852 = vmatprep.subr.mxu0 0.0
        %853 = vmatpush1.msra.mxu0 %v833
        %854 = vmatprep.subr.mxu0 0.0
        %855 = vmatpush1.msra.mxu0 %v834
        %856 = vmatprep.subr.mxu0 0.0
        %857 = vmatpush1.msra.mxu0 %v835
        %858 = vmatprep.subr.mxu0 0.0
        %859 = vmatpush1.msra.mxu0 %v836
        %860 = vmatprep.subr.mxu0 0.0
        %861 = vmatpush1.msra.mxu0 0.0
        %862 = vmatprep.subr.mxu0 0.0
        %863 = vmatpush1.msra.mxu0 0.0
        %864 = vmatprep.subr.mxu0 0.0
        %865 = vmatpush1.msra.mxu0 0.0
        %866 = vmatprep.subr.mxu0 0.0
        %867 = vmatpush1.msra.mxu0 0.0
        %868 = vmatprep.subr.mxu0 0.0
        %869 = vmatpush1.msra.mxu0 0.0
        %870 = vmatprep.subr.mxu0 0.0
        %871 = vmatpush1.msra.mxu0 0.0
        %872 = vmatprep.subr.mxu0 0.0
        %873 = vmatpush1.msra.mxu0 0.0
        %874 = vmatprep.subr.mxu0 0.0
        %875 = vmatpush1.msra.mxu0 0.0
        %876 = vmatprep.subr.mxu0 0.0
        %877 = vmatpush1.msra.mxu0 0.0
        %878 = vmatprep.subr.mxu0 0.0
        %879 = vmatpush1.msra.mxu0 0.0
        %880 = vmatprep.subr.mxu0 0.0
        %881 = vmatpush1.msra.mxu0 0.0
        %882 = vmatprep.subr.mxu0 0.0
        %883 = vmatpush1.msra.mxu0 0.0
        %884 = vmatprep.subr.mxu0 0.0
        %885 = vmatpush1.msra.mxu0 0.0
        %886 = vmatprep.subr.mxu0 0.0
        %887 = vmatpush1.msra.mxu0 0.0
        %888 = vmatprep.subr.mxu0 0.0
        %889 = vmatpush1.msra.mxu0 0.0
        %890 = vmatprep.subr.mxu0 0.0
        %891 = vmatpush1.msra.mxu0 0.0
        %892 = vmatprep.subr.mxu0 0.0
        %893 = vmatpush1.msra.mxu0 0.0
        %894 = vmatprep.subr.mxu0 0.0
        %895 = vmatpush1.msra.mxu0 0.0
        %896 = vmatprep.subr.mxu0 0.0
        %897 = vmatpush1.msra.mxu0 0.0
        %898 = vmatprep.subr.mxu0 0.0
        %899 = vmatpush1.msra.mxu0 0.0
        %900 = vmatprep.subr.mxu0 0.0
        %901 = vmatpush1.msra.mxu0 0.0
        %902 = vmatprep.subr.mxu0 0.0
        %903 = vmatpush1.msra.mxu0 0.0
        %904 = vmatprep.subr.mxu0 0.0
        %905 = vmatpush1.msra.mxu0 0.0
        %906 = vmatprep.subr.mxu0 0.0
        %907 = vmatpush1.msra.mxu0 0.0
        %908 = vmatprep.subr.mxu0 0.0
        %909 = vmatpush1.msra.mxu0 0.0
        %910 = vmatprep.subr.mxu0 0.0
        %911 = vmatpush1.msra.mxu0 0.0
        %912 = vmatprep.subr.mxu0 0.0
        %913 = vmatpush1.msra.mxu0 0.0
        %914 = vmatprep.subr.mxu0 0.0
        %915 = vmatpush1.msra.mxu0 0.0
        %916 = vmatprep.mubr.f32.mxu0 0.0
        %917 = vmatmul.mubr.f32.gmra.mrb[0].mxu0 %v850
        %v918 = vpop.f32.mrb[0].mxu0
        %v919 = vadd.f32 0.0, %v918
        %v920 = vpop.f32.mrb[0].mxu0
        %921 = vdwg.mxu0
        %v922 = vadd.f32 %v847, %v919
        %v923 = vxor.u32 %v922, 2147483648
        %v924 = vmul.f32 %v923, 1.442695
        %v925 = vpow.pop %v924
        %v926 = vadd.f32 %v925, 1.0
        %v927 = vrcp.pop %v926
        %v928 = vmul.f32 1.0, %v927
        %v929 = vtanh.pop %v922
        %931 = vrot.lane.b32.xlu0 %v842, 32
        %v932 = vpop.permute.xlu0 %931
        %v934 = vmul.f32 %v928, %v932
        %936 = vrot.lane.b32.xlu0 %v929, 32
        %v937 = vpop.permute.xlu0 %936
        %v939 = vmul.f32 %v928, %v937
        %941 = vrot.lane.b32.xlu0 %v939, 32
        %v942 = vpop.permute.xlu0 %941
        %v944 = vadd.f32 %v934, %v942
        %v945 = vtanh.pop %v944
        %947 = vrot.lane.b32.xlu0 %v945, 32
        %v948 = vpop.permute.xlu0 %947
        %v950 = vmul.f32 %v928, %v948
        %s951 = scalar_lea.vmem [#allocation7], 24
        %v952 = vld [vmem:[%s951] sm:$0xff]
        %v954 = vsel %vm848, %v843, 0
        %956 = vmatprep.subr.mxu0 0.0
        %957 = vmatpush1.msra.mxu0 %v837
        %958 = vmatprep.subr.mxu0 0.0
        %959 = vmatpush1.msra.mxu0 %v838
        %960 = vmatprep.subr.mxu0 0.0
        %961 = vmatpush1.msra.mxu0 %v839
        %962 = vmatprep.subr.mxu0 0.0
        %963 = vmatpush1.msra.mxu0 %v840
        %964 = vmatprep.subr.mxu0 0.0
        %965 = vmatpush1.msra.mxu0 0.0
        %966 = vmatprep.subr.mxu0 0.0
        %967 = vmatpush1.msra.mxu0 0.0
        %968 = vmatprep.subr.mxu0 0.0
        %969 = vmatpush1.msra.mxu0 0.0
        %970 = vmatprep.subr.mxu0 0.0
        %971 = vmatpush1.msra.mxu0 0.0
        %972 = vmatprep.subr.mxu0 0.0
        %973 = vmatpush1.msra.mxu0 0.0
        %974 = vmatprep.subr.mxu0 0.0
        %975 = vmatpush1.msra.mxu0 0.0
        %976 = vmatprep.subr.mxu0 0.0
        %977 = vmatpush1.msra.mxu0 0.0
        %978 = vmatprep.subr.mxu0 0.0
        %979 = vmatpush1.msra.mxu0 0.0
        %980 = vmatprep.subr.mxu0 0.0
        %981 = vmatpush1.msra.mxu0 0.0
        %982 = vmatprep.subr.mxu0 0.0
        %983 = vmatpush1.msra.mxu0 0.0
        %984 = vmatprep.subr.mxu0 0.0
        %985 = vmatpush1.msra.mxu0 0.0
        %986 = vmatprep.subr.mxu0 0.0
        %987 = vmatpush1.msra.mxu0 0.0
        %988 = vmatprep.subr.mxu0 0.0
        %989 = vmatpush1.msra.mxu0 0.0
        %990 = vmatprep.subr.mxu0 0.0
        %991 = vmatpush1.msra.mxu0 0.0
        %992 = vmatprep.subr.mxu0 0.0
        %993 = vmatpush1.msra.mxu0 0.0
        %994 = vmatprep.subr.mxu0 0.0
        %995 = vmatpush1.msra.mxu0 0.0
        %996 = vmatprep.subr.mxu0 0.0
        %997 = vmatpush1.msra.mxu0 0.0
        %998 = vmatprep.subr.mxu0 0.0
        %999 = vmatpush1.msra.mxu0 0.0
        %1000 = vmatprep.subr.mxu0 0.0
        %1001 = vmatpush1.msra.mxu0 0.0
        %1002 = vmatprep.subr.mxu0 0.0
        %1003 = vmatpush1.msra.mxu0 0.0
        %1004 = vmatprep.subr.mxu0 0.0
        %1005 = vmatpush1.msra.mxu0 0.0
        %1006 = vmatprep.subr.mxu0 0.0
        %1007 = vmatpush1.msra.mxu0 0.0
        %1008 = vmatprep.subr.mxu0 0.0
        %1009 = vmatpush1.msra.mxu0 0.0
        %1010 = vmatprep.subr.mxu0 0.0
        %1011 = vmatpush1.msra.mxu0 0.0
        %1012 = vmatprep.subr.mxu0 0.0
        %1013 = vmatpush1.msra.mxu0 0.0
        %1014 = vmatprep.subr.mxu0 0.0
        %1015 = vmatpush1.msra.mxu0 0.0
        %1016 = vmatprep.subr.mxu0 0.0
        %1017 = vmatpush1.msra.mxu0 0.0
        %1018 = vmatprep.subr.mxu0 0.0
        %1019 = vmatpush1.msra.mxu0 0.0
        %1020 = vmatprep.mubr.f32.mxu0 0.0
        %1021 = vmatmul.mubr.f32.gmra.mrb[0].mxu0 %v954
        %v1022 = vpop.f32.mrb[0].mxu0
        %v1023 = vadd.f32 0.0, %v1022
        %v1024 = vpop.f32.mrb[0].mxu0
        %1025 = vdwg.mxu0
        %v1026 = vadd.f32 %v952, %v1023
        %v1027 = vxor.u32 %v1026, 2147483648
        %v1028 = vmul.f32 %v1027, 1.442695
        %v1029 = vpow.pop %v1028
        %v1030 = vadd.f32 %v1029, 1.0
        %v1031 = vrcp.pop %v1030
        %v1032 = vmul.f32 1.0, %v1031
        %v1033 = vtanh.pop %v1026
        %1035 = vrot.lane.b32.xlu0 %v844, 32
        %v1036 = vpop.permute.xlu0 %1035
        %v1038 = vmul.f32 %v1032, %v1036
        %1040 = vrot.lane.b32.xlu0 %v1033, 32
        %v1041 = vpop.permute.xlu0 %1040
        %v1043 = vmul.f32 %v1032, %v1041
        %1045 = vrot.lane.b32.xlu0 %v1043, 32
        %v1046 = vpop.permute.xlu0 %1045
        %v1048 = vadd.f32 %v1038, %v1046
        %v1049 = vtanh.pop %v1048
        %1051 = vrot.lane.b32.xlu0 %v1049, 32
        %v1052 = vpop.permute.xlu0 %1051
        %v1054 = vmul.f32 %v1032, %v1052
        %v1055 = vstv %s845
        %vm1056 = vcmp.lt.s32.totalorder %v1055, %v832
        %v1057 = vstv %s846
        %vm1058 = vcmp.lt.s32.totalorder %v1057, %v832
        %v1059 = vsel %vm1056, 1, 0
        %1060 = vset.pattern.permute.xlu0 0
        %1061 = vperm.xlu0 %1060, %v1059
        %v1062 = vpop.permute.xlu0 %1061
        %vm1063 = vcmp.eq.s32.totalorder %v1062, 1
        %1064 = vrot.lane.b32.xlu0 %v841, 64
        %v1065 = vpop.permute.xlu0 %1064
        %v1067 = vsel %vm1063, %v950, %v1065
        %v1068 = vsel %vm1063, %v944, %v932
        %v1069 = vsel %vm1058, 1, 0
        %1070 = vset.pattern.permute.xlu0 0
        %1071 = vperm.xlu0 %1070, %v1069
        %v1072 = vpop.permute.xlu0 %1071
        %vm1073 = vcmp.eq.s32.totalorder %v1072, 1
        %1074 = vrot.lane.b32.xlu0 %v843, 64
        %v1075 = vpop.permute.xlu0 %1074
        %v1077 = vsel %vm1073, %v1054, %v1075
        %v1078 = vsel %vm1073, %v1048, %v1036
        %s1079 = sadd.s32 %s845, 1
        %s1080 = ssub.s32 6, %s845
        %s1081 = scalar_lea.vmem [#allocation6], 8
        %v1082 = vld [vmem:[%s1081] sm:$0xff]
        %1084 = vrot.lane.b32.xlu0 %v1067, 64
        %v1085 = vpop.permute.xlu0 %1084
        %v1086 = vsel %vm848, %v1085, 0
        %1088 = vmatprep.subr.mxu0 0.0
        %1089 = vmatpush1.msra.mxu0 %v833
        %1090 = vmatprep.subr.mxu0 0.0
        %1091 = vmatpush1.msra.mxu0 %v834
        %1092 = vmatprep.subr.mxu0 0.0
        %1093 = vmatpush1.msra.mxu0 %v835
        %1094 = vmatprep.subr.mxu0 0.0
        %1095 = vmatpush1.msra.mxu0 %v836
        %1096 = vmatprep.subr.mxu0 0.0
        %1097 = vmatpush1.msra.mxu0 0.0
        %1098 = vmatprep.subr.mxu0 0.0
        %1099 = vmatpush1.msra.mxu0 0.0
        %1100 = vmatprep.subr.mxu0 0.0
        %1101 = vmatpush1.msra.mxu0 0.0
        %1102 = vmatprep.subr.mxu0 0.0
        %1103 = vmatpush1.msra.mxu0 0.0
        %1104 = vmatprep.subr.mxu0 0.0
        %1105 = vmatpush1.msra.mxu0 0.0
        %1106 = vmatprep.subr.mxu0 0.0
        %1107 = vmatpush1.msra.mxu0 0.0
        %1108 = vmatprep.subr.mxu0 0.0
        %1109 = vmatpush1.msra.mxu0 0.0
        %1110 = vmatprep.subr.mxu0 0.0
        %1111 = vmatpush1.msra.mxu0 0.0
        %1112 = vmatprep.subr.mxu0 0.0
        %1113 = vmatpush1.msra.mxu0 0.0
        %1114 = vmatprep.subr.mxu0 0.0
        %1115 = vmatpush1.msra.mxu0 0.0
        %1116 = vmatprep.subr.mxu0 0.0
        %1117 = vmatpush1.msra.mxu0 0.0
        %1118 = vmatprep.subr.mxu0 0.0
        %1119 = vmatpush1.msra.mxu0 0.0
        %1120 = vmatprep.subr.mxu0 0.0
        %1121 = vmatpush1.msra.mxu0 0.0
        %1122 = vmatprep.subr.mxu0 0.0
        %1123 = vmatpush1.msra.mxu0 0.0
        %1124 = vmatprep.subr.mxu0 0.0
        %1125 = vmatpush1.msra.mxu0 0.0
        %1126 = vmatprep.subr.mxu0 0.0
        %1127 = vmatpush1.msra.mxu0 0.0
        %1128 = vmatprep.subr.mxu0 0.0
        %1129 = vmatpush1.msra.mxu0 0.0
        %1130 = vmatprep.subr.mxu0 0.0
        %1131 = vmatpush1.msra.mxu0 0.0
        %1132 = vmatprep.subr.mxu0 0.0
        %1133 = vmatpush1.msra.mxu0 0.0
        %1134 = vmatprep.subr.mxu0 0.0
        %1135 = vmatpush1.msra.mxu0 0.0
        %1136 = vmatprep.subr.mxu0 0.0
        %1137 = vmatpush1.msra.mxu0 0.0
        %1138 = vmatprep.subr.mxu0 0.0
        %1139 = vmatpush1.msra.mxu0 0.0
        %1140 = vmatprep.subr.mxu0 0.0
        %1141 = vmatpush1.msra.mxu0 0.0
        %1142 = vmatprep.subr.mxu0 0.0
        %1143 = vmatpush1.msra.mxu0 0.0
        %1144 = vmatprep.subr.mxu0 0.0
        %1145 = vmatpush1.msra.mxu0 0.0
        %1146 = vmatprep.subr.mxu0 0.0
        %1147 = vmatpush1.msra.mxu0 0.0
        %1148 = vmatprep.subr.mxu0 0.0
        %1149 = vmatpush1.msra.mxu0 0.0
        %1150 = vmatprep.subr.mxu0 0.0
        %1151 = vmatpush1.msra.mxu0 0.0
        %1152 = vmatprep.mubr.f32.mxu0 0.0
        %1153 = vmatmul.mubr.f32.gmra.mrb[0].mxu0 %v1086
        %v1154 = vpop.f32.mrb[0].mxu0
        %v1155 = vadd.f32 0.0, %v1154
        %v1156 = vpop.f32.mrb[0].mxu0
        %1157 = vdwg.mxu0
        %v1158 = vadd.f32 %v1082, %v1155
        %v1159 = vxor.u32 %v1158, 2147483648
        %v1160 = vmul.f32 %v1159, 1.442695
        %v1161 = vpow.pop %v1160
        %v1162 = vadd.f32 %v1161, 1.0
        %v1163 = vrcp.pop %v1162
        %v1164 = vmul.f32 1.0, %v1163
        %v1165 = vtanh.pop %v1158
        %v1166 = vmul.f32 %v1164, %v1068
        %1168 = vrot.lane.b32.xlu0 %v1165, 32
        %v1169 = vpop.permute.xlu0 %1168
        %v1171 = vmul.f32 %v1164, %v1169
        %1173 = vrot.lane.b32.xlu0 %v1171, 32
        %v1174 = vpop.permute.xlu0 %1173
        %v1176 = vadd.f32 %v1166, %v1174
        %v1177 = vtanh.pop %v1176
        %1179 = vrot.lane.b32.xlu0 %v1177, 32
        %v1180 = vpop.permute.xlu0 %1179
        %v1182 = vmul.f32 %v1164, %v1180
        %s1183 = scalar_lea.vmem [#allocation7], 16
        %v1184 = vld [vmem:[%s1183] sm:$0xff]
        %1186 = vrot.lane.b32.xlu0 %v1077, 64
        %v1187 = vpop.permute.xlu0 %1186
        %v1188 = vsel %vm848, %v1187, 0
        %1190 = vmatprep.subr.mxu0 0.0
        %1191 = vmatpush1.msra.mxu0 %v837
        %1192 = vmatprep.subr.mxu0 0.0
        %1193 = vmatpush1.msra.mxu0 %v838
        %1194 = vmatprep.subr.mxu0 0.0
        %1195 = vmatpush1.msra.mxu0 %v839
        %1196 = vmatprep.subr.mxu0 0.0
        %1197 = vmatpush1.msra.mxu0 %v840
        %1198 = vmatprep.subr.mxu0 0.0
        %1199 = vmatpush1.msra.mxu0 0.0
        %1200 = vmatprep.subr.mxu0 0.0
        %1201 = vmatpush1.msra.mxu0 0.0
        %1202 = vmatprep.subr.mxu0 0.0
        %1203 = vmatpush1.msra.mxu0 0.0
        %1204 = vmatprep.subr.mxu0 0.0
        %1205 = vmatpush1.msra.mxu0 0.0
        %1206 = vmatprep.subr.mxu0 0.0
        %1207 = vmatpush1.msra.mxu0 0.0
        %1208 = vmatprep.subr.mxu0 0.0
        %1209 = vmatpush1.msra.mxu0 0.0
        %1210 = vmatprep.subr.mxu0 0.0
        %1211 = vmatpush1.msra.mxu0 0.0
        %1212 = vmatprep.subr.mxu0 0.0
        %1213 = vmatpush1.msra.mxu0 0.0
        %1214 = vmatprep.subr.mxu0 0.0
        %1215 = vmatpush1.msra.mxu0 0.0
        %1216 = vmatprep.subr.mxu0 0.0
        %1217 = vmatpush1.msra.mxu0 0.0
        %1218 = vmatprep.subr.mxu0 0.0
        %1219 = vmatpush1.msra.mxu0 0.0
        %1220 = vmatprep.subr.mxu0 0.0
        %1221 = vmatpush1.msra.mxu0 0.0
        %1222 = vmatprep.subr.mxu0 0.0
        %1223 = vmatpush1.msra.mxu0 0.0
        %1224 = vmatprep.subr.mxu0 0.0
        %1225 = vmatpush1.msra.mxu0 0.0
        %1226 = vmatprep.subr.mxu0 0.0
        %1227 = vmatpush1.msra.mxu0 0.0
        %1228 = vmatprep.subr.mxu0 0.0
        %1229 = vmatpush1.msra.mxu0 0.0
        %1230 = vmatprep.subr.mxu0 0.0
        %1231 = vmatpush1.msra.mxu0 0.0
        %1232 = vmatprep.subr.mxu0 0.0
        %1233 = vmatpush1.msra.mxu0 0.0
        %1234 = vmatprep.subr.mxu0 0.0
        %1235 = vmatpush1.msra.mxu0 0.0
        %1236 = vmatprep.subr.mxu0 0.0
        %1237 = vmatpush1.msra.mxu0 0.0
        %1238 = vmatprep.subr.mxu0 0.0
        %1239 = vmatpush1.msra.mxu0 0.0
        %1240 = vmatprep.subr.mxu0 0.0
        %1241 = vmatpush1.msra.mxu0 0.0
        %1242 = vmatprep.subr.mxu0 0.0
        %1243 = vmatpush1.msra.mxu0 0.0
        %1244 = vmatprep.subr.mxu0 0.0
        %1245 = vmatpush1.msra.mxu0 0.0
        %1246 = vmatprep.subr.mxu0 0.0
        %1247 = vmatpush1.msra.mxu0 0.0
        %1248 = vmatprep.subr.mxu0 0.0
        %1249 = vmatpush1.msra.mxu0 0.0
        %1250 = vmatprep.subr.mxu0 0.0
        %1251 = vmatpush1.msra.mxu0 0.0
        %1252 = vmatprep.subr.mxu0 0.0
        %1253 = vmatpush1.msra.mxu0 0.0
        %1254 = vmatprep.mubr.f32.mxu0 0.0
        %1255 = vmatmul.mubr.f32.gmra.mrb[0].mxu0 %v1188
        %v1256 = vpop.f32.mrb[0].mxu0
        %v1257 = vadd.f32 0.0, %v1256
        %v1258 = vpop.f32.mrb[0].mxu0
        %1259 = vdwg.mxu0
        %v1260 = vadd.f32 %v1184, %v1257
        %v1261 = vxor.u32 %v1260, 2147483648
        %v1262 = vmul.f32 %v1261, 1.442695
        %v1263 = vpow.pop %v1262
        %v1264 = vadd.f32 %v1263, 1.0
        %v1265 = vrcp.pop %v1264
        %v1266 = vmul.f32 1.0, %v1265
        %v1267 = vtanh.pop %v1260
        %v1268 = vmul.f32 %v1266, %v1078
        %1270 = vrot.lane.b32.xlu0 %v1267, 32
        %v1271 = vpop.permute.xlu0 %1270
        %v1273 = vmul.f32 %v1266, %v1271
        %1275 = vrot.lane.b32.xlu0 %v1273, 32
        %v1276 = vpop.permute.xlu0 %1275
        %v1278 = vadd.f32 %v1268, %v1276
        %v1279 = vtanh.pop %v1278
        %1281 = vrot.lane.b32.xlu0 %v1279, 32
        %v1282 = vpop.permute.xlu0 %1281
        %v1284 = vmul.f32 %v1266, %v1282
        %v1285 = vstv %s1079
        %vm1286 = vcmp.lt.s32.totalorder %v1285, %v832
        %v1287 = vstv %s1080
        %vm1288 = vcmp.lt.s32.totalorder %v1287, %v832
        %v1289 = vsel %vm1286, 1, 0
        %1290 = vset.pattern.permute.xlu0 0
        %1291 = vperm.xlu0 %1290, %v1289
        %v1292 = vpop.permute.xlu0 %1291
        %vm1293 = vcmp.eq.s32.totalorder %v1292, 1
        %v1294 = vsel %vm1293, %v1182, %v1067
        %v1295 = vsel %vm1293, %v1176, %v1068
        %v1296 = vsel %vm1288, 1, 0
        %1297 = vset.pattern.permute.xlu0 0
        %1298 = vperm.xlu0 %1297, %v1296
        %v1299 = vpop.permute.xlu0 %1298
        %vm1300 = vcmp.eq.s32.totalorder %v1299, 1
        %v1301 = vsel %vm1300, %v1284, %v1077
        %v1302 = vsel %vm1300, %v1278, %v1078
        %s1303 = sadd.s32 %s845, 2
        %s1304 = ssub.s32 5, %s845
        %s1305 = scalar_lea.vmem [#allocation6], 16
        %v1306 = vld [vmem:[%s1305] sm:$0xff]
        %1308 = vrot.lane.b32.xlu0 %v1294, 64
        %v1309 = vpop.permute.xlu0 %1308
        %v1310 = vsel %vm848, %v1309, 0
        %1312 = vmatprep.subr.mxu0 0.0
        %1313 = vmatpush1.msra.mxu0 %v833
        %1314 = vmatprep.subr.mxu0 0.0
        %1315 = vmatpush1.msra.mxu0 %v834
        %1316 = vmatprep.subr.mxu0 0.0
        %1317 = vmatpush1.msra.mxu0 %v835
        %1318 = vmatprep.subr.mxu0 0.0
        %1319 = vmatpush1.msra.mxu0 %v836
        %1320 = vmatprep.subr.mxu0 0.0
        %1321 = vmatpush1.msra.mxu0 0.0
        %1322 = vmatprep.subr.mxu0 0.0
        %1323 = vmatpush1.msra.mxu0 0.0
        %1324 = vmatprep.subr.mxu0 0.0
        %1325 = vmatpush1.msra.mxu0 0.0
        %1326 = vmatprep.subr.mxu0 0.0
        %1327 = vmatpush1.msra.mxu0 0.0
        %1328 = vmatprep.subr.mxu0 0.0
        %1329 = vmatpush1.msra.mxu0 0.0
        %1330 = vmatprep.subr.mxu0 0.0
        %1331 = vmatpush1.msra.mxu0 0.0
        %1332 = vmatprep.subr.mxu0 0.0
        %1333 = vmatpush1.msra.mxu0 0.0
        %1334 = vmatprep.subr.mxu0 0.0
        %1335 = vmatpush1.msra.mxu0 0.0
        %1336 = vmatprep.subr.mxu0 0.0
        %1337 = vmatpush1.msra.mxu0 0.0
        %1338 = vmatprep.subr.mxu0 0.0
        %1339 = vmatpush1.msra.mxu0 0.0
        %1340 = vmatprep.subr.mxu0 0.0
        %1341 = vmatpush1.msra.mxu0 0.0
        %1342 = vmatprep.subr.mxu0 0.0
        %1343 = vmatpush1.msra.mxu0 0.0
        %1344 = vmatprep.subr.mxu0 0.0
        %1345 = vmatpush1.msra.mxu0 0.0
        %1346 = vmatprep.subr.mxu0 0.0
        %1347 = vmatpush1.msra.mxu0 0.0
        %1348 = vmatprep.subr.mxu0 0.0
        %1349 = vmatpush1.msra.mxu0 0.0
        %1350 = vmatprep.subr.mxu0 0.0
        %1351 = vmatpush1.msra.mxu0 0.0
        %1352 = vmatprep.subr.mxu0 0.0
        %1353 = vmatpush1.msra.mxu0 0.0
        %1354 = vmatprep.subr.mxu0 0.0
        %1355 = vmatpush1.msra.mxu0 0.0
        %1356 = vmatprep.subr.mxu0 0.0
        %1357 = vmatpush1.msra.mxu0 0.0
        %1358 = vmatprep.subr.mxu0 0.0
        %1359 = vmatpush1.msra.mxu0 0.0
        %1360 = vmatprep.subr.mxu0 0.0
        %1361 = vmatpush1.msra.mxu0 0.0
        %1362 = vmatprep.subr.mxu0 0.0
        %1363 = vmatpush1.msra.mxu0 0.0
        %1364 = vmatprep.subr.mxu0 0.0
        %1365 = vmatpush1.msra.mxu0 0.0
        %1366 = vmatprep.subr.mxu0 0.0
        %1367 = vmatpush1.msra.mxu0 0.0
        %1368 = vmatprep.subr.mxu0 0.0
        %1369 = vmatpush1.msra.mxu0 0.0
        %1370 = vmatprep.subr.mxu0 0.0
        %1371 = vmatpush1.msra.mxu0 0.0
        %1372 = vmatprep.subr.mxu0 0.0
        %1373 = vmatpush1.msra.mxu0 0.0
        %1374 = vmatprep.subr.mxu0 0.0
        %1375 = vmatpush1.msra.mxu0 0.0
        %1376 = vmatprep.mubr.f32.mxu0 0.0
        %1377 = vmatmul.mubr.f32.gmra.mrb[0].mxu0 %v1310
        %v1378 = vpop.f32.mrb[0].mxu0
        %v1379 = vadd.f32 0.0, %v1378
        %v1380 = vpop.f32.mrb[0].mxu0
        %1381 = vdwg.mxu0
        %v1382 = vadd.f32 %v1306, %v1379
        %v1383 = vxor.u32 %v1382, 2147483648
        %v1384 = vmul.f32 %v1383, 1.442695
        %v1385 = vpow.pop %v1384
        %v1386 = vadd.f32 %v1385, 1.0
        %v1387 = vrcp.pop %v1386
        %v1388 = vmul.f32 1.0, %v1387
        %v1389 = vtanh.pop %v1382
        %v1390 = vmul.f32 %v1388, %v1295
        %1392 = vrot.lane.b32.xlu0 %v1389, 32
        %v1393 = vpop.permute.xlu0 %1392
        %v1395 = vmul.f32 %v1388, %v1393
        %1397 = vrot.lane.b32.xlu0 %v1395, 32
        %v1398 = vpop.permute.xlu0 %1397
        %v1400 = vadd.f32 %v1390, %v1398
        %v1401 = vtanh.pop %v1400
        %1403 = vrot.lane.b32.xlu0 %v1401, 32
        %v1404 = vpop.permute.xlu0 %1403
        %v1406 = vmul.f32 %v1388, %v1404
        %s1407 = scalar_lea.vmem [#allocation7], 8
        %v1408 = vld [vmem:[%s1407] sm:$0xff]
        %1410 = vrot.lane.b32.xlu0 %v1301, 64
        %v1411 = vpop.permute.xlu0 %1410
        %v1412 = vsel %vm848, %v1411, 0
        %1414 = vmatprep.subr.mxu0 0.0
        %1415 = vmatpush1.msra.mxu0 %v837
        %1416 = vmatprep.subr.mxu0 0.0
        %1417 = vmatpush1.msra.mxu0 %v838
        %1418 = vmatprep.subr.mxu0 0.0
        %1419 = vmatpush1.msra.mxu0 %v839
        %1420 = vmatprep.subr.mxu0 0.0
        %1421 = vmatpush1.msra.mxu0 %v840
        %1422 = vmatprep.subr.mxu0 0.0
        %1423 = vmatpush1.msra.mxu0 0.0
        %1424 = vmatprep.subr.mxu0 0.0
        %1425 = vmatpush1.msra.mxu0 0.0
        %1426 = vmatprep.subr.mxu0 0.0
        %1427 = vmatpush1.msra.mxu0 0.0
        %1428 = vmatprep.subr.mxu0 0.0
        %1429 = vmatpush1.msra.mxu0 0.0
        %1430 = vmatprep.subr.mxu0 0.0
        %1431 = vmatpush1.msra.mxu0 0.0
        %1432 = vmatprep.subr.mxu0 0.0
        %1433 = vmatpush1.msra.mxu0 0.0
        %1434 = vmatprep.subr.mxu0 0.0
        %1435 = vmatpush1.msra.mxu0 0.0
        %1436 = vmatprep.subr.mxu0 0.0
        %1437 = vmatpush1.msra.mxu0 0.0
        %1438 = vmatprep.subr.mxu0 0.0
        %1439 = vmatpush1.msra.mxu0 0.0
        %1440 = vmatprep.subr.mxu0 0.0
        %1441 = vmatpush1.msra.mxu0 0.0
        %1442 = vmatprep.subr.mxu0 0.0
        %1443 = vmatpush1.msra.mxu0 0.0
        %1444 = vmatprep.subr.mxu0 0.0
        %1445 = vmatpush1.msra.mxu0 0.0
        %1446 = vmatprep.subr.mxu0 0.0
        %1447 = vmatpush1.msra.mxu0 0.0
        %1448 = vmatprep.subr.mxu0 0.0
        %1449 = vmatpush1.msra.mxu0 0.0
        %1450 = vmatprep.subr.mxu0 0.0
        %1451 = vmatpush1.msra.mxu0 0.0
        %1452 = vmatprep.subr.mxu0 0.0
        %1453 = vmatpush1.msra.mxu0 0.0
        %1454 = vmatprep.subr.mxu0 0.0
        %1455 = vmatpush1.msra.mxu0 0.0
        %1456 = vmatprep.subr.mxu0 0.0
        %1457 = vmatpush1.msra.mxu0 0.0
        %1458 = vmatprep.subr.mxu0 0.0
        %1459 = vmatpush1.msra.mxu0 0.0
        %1460 = vmatprep.subr.mxu0 0.0
        %1461 = vmatpush1.msra.mxu0 0.0
        %1462 = vmatprep.subr.mxu0 0.0
        %1463 = vmatpush1.msra.mxu0 0.0
        %1464 = vmatprep.subr.mxu0 0.0
        %1465 = vmatpush1.msra.mxu0 0.0
        %1466 = vmatprep.subr.mxu0 0.0
        %1467 = vmatpush1.msra.mxu0 0.0
        %1468 = vmatprep.subr.mxu0 0.0
        %1469 = vmatpush1.msra.mxu0 0.0
        %1470 = vmatprep.subr.mxu0 0.0
        %1471 = vmatpush1.msra.mxu0 0.0
        %1472 = vmatprep.subr.mxu0 0.0
        %1473 = vmatpush1.msra.mxu0 0.0
        %1474 = vmatprep.subr.mxu0 0.0
        %1475 = vmatpush1.msra.mxu0 0.0
        %1476 = vmatprep.subr.mxu0 0.0
        %1477 = vmatpush1.msra.mxu0 0.0
        %1478 = vmatprep.mubr.f32.mxu0 0.0
        %1479 = vmatmul.mubr.f32.gmra.mrb[0].mxu0 %v1412
        %v1480 = vpop.f32.mrb[0].mxu0
        %v1481 = vadd.f32 0.0, %v1480
        %v1482 = vpop.f32.mrb[0].mxu0
        %1483 = vdwg.mxu0
        %v1484 = vadd.f32 %v1408, %v1481
        %v1485 = vxor.u32 %v1484, 2147483648
        %v1486 = vmul.f32 %v1485, 1.442695
        %v1487 = vpow.pop %v1486
        %v1488 = vadd.f32 %v1487, 1.0
        %v1489 = vrcp.pop %v1488
        %v1490 = vmul.f32 1.0, %v1489
        %v1491 = vtanh.pop %v1484
        %v1492 = vmul.f32 %v1490, %v1302
        %1494 = vrot.lane.b32.xlu0 %v1491, 32
        %v1495 = vpop.permute.xlu0 %1494
        %v1497 = vmul.f32 %v1490, %v1495
        %1499 = vrot.lane.b32.xlu0 %v1497, 32
        %v1500 = vpop.permute.xlu0 %1499
        %v1502 = vadd.f32 %v1492, %v1500
        %v1503 = vtanh.pop %v1502
        %1505 = vrot.lane.b32.xlu0 %v1503, 32
        %v1506 = vpop.permute.xlu0 %1505
        %v1508 = vmul.f32 %v1490, %v1506
        %v1509 = vstv %s1303
        %vm1510 = vcmp.lt.s32.totalorder %v1509, %v832
        %v1511 = vstv %s1304
        %vm1512 = vcmp.lt.s32.totalorder %v1511, %v832
        %v1513 = vsel %vm1510, 1, 0
        %1514 = vset.pattern.permute.xlu0 0
        %1515 = vperm.xlu0 %1514, %v1513
        %v1516 = vpop.permute.xlu0 %1515
        %vm1517 = vcmp.eq.s32.totalorder %v1516, 1
        %v1518 = vsel %vm1517, %v1406, %v1294
        %v1519 = vsel %vm1517, %v1400, %v1295
        %v1520 = vsel %vm1512, 1, 0
        %1521 = vset.pattern.permute.xlu0 0
        %1522 = vperm.xlu0 %1521, %v1520
        %v1523 = vpop.permute.xlu0 %1522
        %vm1524 = vcmp.eq.s32.totalorder %v1523, 1
        %v1525 = vsel %vm1524, %v1508, %v1301
        %v1526 = vsel %vm1524, %v1502, %v1302
        %s1527 = sadd.s32 %s845, 3
        %s1528 = ssub.s32 4, %s845
        %s1529 = scalar_lea.vmem [#allocation6], 24
        %v1530 = vld [vmem:[%s1529] sm:$0xff]
        %1532 = vrot.lane.b32.xlu0 %v1518, 64
        %v1533 = vpop.permute.xlu0 %1532
        %v1534 = vsel %vm848, %v1533, 0
        %1536 = vmatprep.subr.mxu0 0.0
        %1537 = vmatpush1.msra.mxu0 %v833
        %1538 = vmatprep.subr.mxu0 0.0
        %1539 = vmatpush1.msra.mxu0 %v834
        %1540 = vmatprep.subr.mxu0 0.0
        %1541 = vmatpush1.msra.mxu0 %v835
        %1542 = vmatprep.subr.mxu0 0.0
        %1543 = vmatpush1.msra.mxu0 %v836
        %1544 = vmatprep.subr.mxu0 0.0
        %1545 = vmatpush1.msra.mxu0 0.0
        %1546 = vmatprep.subr.mxu0 0.0
        %1547 = vmatpush1.msra.mxu0 0.0
        %1548 = vmatprep.subr.mxu0 0.0
        %1549 = vmatpush1.msra.mxu0 0.0
        %1550 = vmatprep.subr.mxu0 0.0
        %1551 = vmatpush1.msra.mxu0 0.0
        %1552 = vmatprep.subr.mxu0 0.0
        %1553 = vmatpush1.msra.mxu0 0.0
        %1554 = vmatprep.subr.mxu0 0.0
        %1555 = vmatpush1.msra.mxu0 0.0
        %1556 = vmatprep.subr.mxu0 0.0
        %1557 = vmatpush1.msra.mxu0 0.0
        %1558 = vmatprep.subr.mxu0 0.0
        %1559 = vmatpush1.msra.mxu0 0.0
        %1560 = vmatprep.subr.mxu0 0.0
        %1561 = vmatpush1.msra.mxu0 0.0
        %1562 = vmatprep.subr.mxu0 0.0
        %1563 = vmatpush1.msra.mxu0 0.0
        %1564 = vmatprep.subr.mxu0 0.0
        %1565 = vmatpush1.msra.mxu0 0.0
        %1566 = vmatprep.subr.mxu0 0.0
        %1567 = vmatpush1.msra.mxu0 0.0
        %1568 = vmatprep.subr.mxu0 0.0
        %1569 = vmatpush1.msra.mxu0 0.0
        %1570 = vmatprep.subr.mxu0 0.0
        %1571 = vmatpush1.msra.mxu0 0.0
        %1572 = vmatprep.subr.mxu0 0.0
        %1573 = vmatpush1.msra.mxu0 0.0
        %1574 = vmatprep.subr.mxu0 0.0
        %1575 = vmatpush1.msra.mxu0 0.0
        %1576 = vmatprep.subr.mxu0 0.0
        %1577 = vmatpush1.msra.mxu0 0.0
        %1578 = vmatprep.subr.mxu0 0.0
        %1579 = vmatpush1.msra.mxu0 0.0
        %1580 = vmatprep.subr.mxu0 0.0
        %1581 = vmatpush1.msra.mxu0 0.0
        %1582 = vmatprep.subr.mxu0 0.0
        %1583 = vmatpush1.msra.mxu0 0.0
        %1584 = vmatprep.subr.mxu0 0.0
        %1585 = vmatpush1.msra.mxu0 0.0
        %1586 = vmatprep.subr.mxu0 0.0
        %1587 = vmatpush1.msra.mxu0 0.0
        %1588 = vmatprep.subr.mxu0 0.0
        %1589 = vmatpush1.msra.mxu0 0.0
        %1590 = vmatprep.subr.mxu0 0.0
        %1591 = vmatpush1.msra.mxu0 0.0
        %1592 = vmatprep.subr.mxu0 0.0
        %1593 = vmatpush1.msra.mxu0 0.0
        %1594 = vmatprep.subr.mxu0 0.0
        %1595 = vmatpush1.msra.mxu0 0.0
        %1596 = vmatprep.subr.mxu0 0.0
        %1597 = vmatpush1.msra.mxu0 0.0
        %1598 = vmatprep.subr.mxu0 0.0
        %1599 = vmatpush1.msra.mxu0 0.0
        %1600 = vmatprep.mubr.f32.mxu0 0.0
        %1601 = vmatmul.mubr.f32.gmra.mrb[0].mxu0 %v1534
        %v1602 = vpop.f32.mrb[0].mxu0
        %v1603 = vadd.f32 0.0, %v1602
        %v1604 = vpop.f32.mrb[0].mxu0
        %1605 = vdwg.mxu0
        %v1606 = vadd.f32 %v1530, %v1603
        %v1607 = vxor.u32 %v1606, 2147483648
        %v1608 = vmul.f32 %v1607, 1.442695
        %v1609 = vpow.pop %v1608
        %v1610 = vadd.f32 %v1609, 1.0
        %v1611 = vrcp.pop %v1610
        %v1612 = vmul.f32 1.0, %v1611
        %v1613 = vtanh.pop %v1606
        %v1614 = vmul.f32 %v1612, %v1519
        %1616 = vrot.lane.b32.xlu0 %v1613, 32
        %v1617 = vpop.permute.xlu0 %1616
        %v1619 = vmul.f32 %v1612, %v1617
        %1621 = vrot.lane.b32.xlu0 %v1619, 32
        %v1622 = vpop.permute.xlu0 %1621
        %v1624 = vadd.f32 %v1614, %v1622
        %v1625 = vtanh.pop %v1624
        %1627 = vrot.lane.b32.xlu0 %v1625, 32
        %v1628 = vpop.permute.xlu0 %1627
        %v1630 = vmul.f32 %v1612, %v1628
        %v1631 = vld [vmem:[#allocation7] sm:$0xff]
        %1633 = vrot.lane.b32.xlu0 %v1525, 64
        %v1634 = vpop.permute.xlu0 %1633
        %v1635 = vsel %vm848, %v1634, 0
        %1637 = vmatprep.subr.mxu0 0.0
        %1638 = vmatpush1.msra.mxu0 %v837
        %1639 = vmatprep.subr.mxu0 0.0
        %1640 = vmatpush1.msra.mxu0 %v838
        %1641 = vmatprep.subr.mxu0 0.0
        %1642 = vmatpush1.msra.mxu0 %v839
        %1643 = vmatprep.subr.mxu0 0.0
        %1644 = vmatpush1.msra.mxu0 %v840
        %1645 = vmatprep.subr.mxu0 0.0
        %1646 = vmatpush1.msra.mxu0 0.0
        %1647 = vmatprep.subr.mxu0 0.0
        %1648 = vmatpush1.msra.mxu0 0.0
        %1649 = vmatprep.subr.mxu0 0.0
        %1650 = vmatpush1.msra.mxu0 0.0
        %1651 = vmatprep.subr.mxu0 0.0
        %1652 = vmatpush1.msra.mxu0 0.0
        %1653 = vmatprep.subr.mxu0 0.0
        %1654 = vmatpush1.msra.mxu0 0.0
        %1655 = vmatprep.subr.mxu0 0.0
        %1656 = vmatpush1.msra.mxu0 0.0
        %1657 = vmatprep.subr.mxu0 0.0
        %1658 = vmatpush1.msra.mxu0 0.0
        %1659 = vmatprep.subr.mxu0 0.0
        %1660 = vmatpush1.msra.mxu0 0.0
        %1661 = vmatprep.subr.mxu0 0.0
        %1662 = vmatpush1.msra.mxu0 0.0
        %1663 = vmatprep.subr.mxu0 0.0
        %1664 = vmatpush1.msra.mxu0 0.0
        %1665 = vmatprep.subr.mxu0 0.0
        %1666 = vmatpush1.msra.mxu0 0.0
        %1667 = vmatprep.subr.mxu0 0.0
        %1668 = vmatpush1.msra.mxu0 0.0
        %1669 = vmatprep.subr.mxu0 0.0
        %1670 = vmatpush1.msra.mxu0 0.0
        %1671 = vmatprep.subr.mxu0 0.0
        %1672 = vmatpush1.msra.mxu0 0.0
        %1673 = vmatprep.subr.mxu0 0.0
        %1674 = vmatpush1.msra.mxu0 0.0
        %1675 = vmatprep.subr.mxu0 0.0
        %1676 = vmatpush1.msra.mxu0 0.0
        %1677 = vmatprep.subr.mxu0 0.0
        %1678 = vmatpush1.msra.mxu0 0.0
        %1679 = vmatprep.subr.mxu0 0.0
        %1680 = vmatpush1.msra.mxu0 0.0
        %1681 = vmatprep.subr.mxu0 0.0
        %1682 = vmatpush1.msra.mxu0 0.0
        %1683 = vmatprep.subr.mxu0 0.0
        %1684 = vmatpush1.msra.mxu0 0.0
        %1685 = vmatprep.subr.mxu0 0.0
        %1686 = vmatpush1.msra.mxu0 0.0
        %1687 = vmatprep.subr.mxu0 0.0
        %1688 = vmatpush1.msra.mxu0 0.0
        %1689 = vmatprep.subr.mxu0 0.0
        %1690 = vmatpush1.msra.mxu0 0.0
        %1691 = vmatprep.subr.mxu0 0.0
        %1692 = vmatpush1.msra.mxu0 0.0
        %1693 = vmatprep.subr.mxu0 0.0
        %1694 = vmatpush1.msra.mxu0 0.0
        %1695 = vmatprep.subr.mxu0 0.0
        %1696 = vmatpush1.msra.mxu0 0.0
        %1697 = vmatprep.subr.mxu0 0.0
        %1698 = vmatpush1.msra.mxu0 0.0
        %1699 = vmatprep.subr.mxu0 0.0
        %1700 = vmatpush1.msra.mxu0 0.0
        %1701 = vmatprep.mubr.f32.mxu0 0.0
        %1702 = vmatmul.mubr.f32.gmra.mrb[0].mxu0 %v1635
        %v1703 = vpop.f32.mrb[0].mxu0
        %v1704 = vadd.f32 0.0, %v1703
        %v1705 = vpop.f32.mrb[0].mxu0
        %1706 = vdwg.mxu0
        %v1707 = vadd.f32 %v1631, %v1704
        %v1708 = vxor.u32 %v1707, 2147483648
        %v1709 = vmul.f32 %v1708, 1.442695
        %v1710 = vpow.pop %v1709
        %v1711 = vadd.f32 %v1710, 1.0
        %v1712 = vrcp.pop %v1711
        %v1713 = vmul.f32 1.0, %v1712
        %v1714 = vtanh.pop %v1707
        %v1715 = vmul.f32 %v1713, %v1526
        %1717 = vrot.lane.b32.xlu0 %v1714, 32
        %v1718 = vpop.permute.xlu0 %1717
        %v1720 = vmul.f32 %v1713, %v1718
        %1722 = vrot.lane.b32.xlu0 %v1720, 32
        %v1723 = vpop.permute.xlu0 %1722
        %v1725 = vadd.f32 %v1715, %v1723
        %v1726 = vtanh.pop %v1725
        %1728 = vrot.lane.b32.xlu0 %v1726, 32
        %v1729 = vpop.permute.xlu0 %1728
        %v1731 = vmul.f32 %v1713, %v1729
        %v1732 = vstv %s1527
        %vm1733 = vcmp.lt.s32.totalorder %v1732, %v832
        %v1734 = vstv %s1528
        %vm1735 = vcmp.lt.s32.totalorder %v1734, %v832
        %v1736 = vsel %vm1733, 1, 0
        %1737 = vset.pattern.permute.xlu0 0
        %1738 = vperm.xlu0 %1737, %v1736
        %v1739 = vpop.permute.xlu0 %1738
        %vm1740 = vcmp.eq.s32.totalorder %v1739, 1
        %v1741 = vsel %vm1740, %v1630, %v1518
        %v1742 = vsel %vm1740, %v1624, %v1519
        %v1743 = vsel %vm1735, 1, 0
        %1744 = vset.pattern.permute.xlu0 0
        %1745 = vperm.xlu0 %1744, %v1743
        %v1746 = vpop.permute.xlu0 %1745
        %vm1747 = vcmp.eq.s32.totalorder %v1746, 1
        %v1748 = vsel %vm1747, %v1731, %v1525
        %v1749 = vsel %vm1747, %v1725, %v1526
        %1751 = vrot.lane.b32.xlu0 %v1741, 64
        %v1752 = vpop.permute.xlu0 %1751
        %1754 = vst.msk [vmem:[#allocation2] sm:$0xff] %vm848, %v1752
        %1756 = vrot.lane.b32.xlu0 %v1742, 96
        %v1757 = vpop.permute.xlu0 %1756
        %1759 = vst.msk [vmem:[#allocation3] sm:$0xff] %vm848, %v1757
        %1761 = vrot.lane.b32.xlu0 %v1748, 64
        %v1762 = vpop.permute.xlu0 %1761
        %1764 = vst.msk [vmem:[#allocation4] sm:$0xff] %vm848, %v1762
        %1766 = vrot.lane.b32.xlu0 %v1749, 96
        %v1767 = vpop.permute.xlu0 %1766
        %1769 = vst.msk [vmem:[#allocation5] sm:$0xff] %vm848, %v1767
        %p1770 = scmp.eq.s32.totalorder %s38, 1
        // Predicated region
        $region113: #{tpu_custom_call.1} parent=63 // pred_check
          %p1771 = pneg %p1770
        $region114: #{tpu_custom_call.1} parent=63 // pred_check_branch
          %1773 = sbr.rel (%p1771) target = $region116
        $region115: #{tpu_custom_call.1} parent=63 // pred_region
          %v1774 = vld [vmem:[#allocation23] sm:$0xff]
          %v1775 = vld [vmem:[#allocation23 + $0x8] sm:$0xff]
          %v1776 = vld [vmem:[#allocation23 + $0x10] sm:$0xff]
          %v1777 = vld [vmem:[#allocation23 + $0x18] sm:$0xff]
          %v1778 = vld [vmem:[#allocation23 + $0x20] sm:$0xff]
          %v1779 = vld [vmem:[#allocation23 + $0x28] sm:$0xff]
          %v1780 = vld [vmem:[#allocation23 + $0x30] sm:$0xff]
          %v1781 = vld [vmem:[#allocation23 + $0x38] sm:$0xff]
          %v1782 = vsel %vm848, %v1762, 0
          %1784 = vmatprep.subr.mxu0 0.0
          %1785 = vmatpush1.msra.mxu0 %v1778
          %1786 = vmatprep.subr.mxu0 0.0
          %1787 = vmatpush1.msra.mxu0 %v1779
          %1788 = vmatprep.subr.mxu0 0.0
          %1789 = vmatpush1.msra.mxu0 %v1780
          %1790 = vmatprep.subr.mxu0 0.0
          %1791 = vmatpush1.msra.mxu0 %v1781
          %1792 = vmatprep.subr.mxu0 0.0
          %1793 = vmatpush1.msra.mxu0 0.0
          %1794 = vmatprep.subr.mxu0 0.0
          %1795 = vmatpush1.msra.mxu0 0.0
          %1796 = vmatprep.subr.mxu0 0.0
          %1797 = vmatpush1.msra.mxu0 0.0
          %1798 = vmatprep.subr.mxu0 0.0
          %1799 = vmatpush1.msra.mxu0 0.0
          %1800 = vmatprep.subr.mxu0 0.0
          %1801 = vmatpush1.msra.mxu0 0.0
          %1802 = vmatprep.subr.mxu0 0.0
          %1803 = vmatpush1.msra.mxu0 0.0
          %1804 = vmatprep.subr.mxu0 0.0
          %1805 = vmatpush1.msra.mxu0 0.0
          %1806 = vmatprep.subr.mxu0 0.0
          %1807 = vmatpush1.msra.mxu0 0.0
          %1808 = vmatprep.subr.mxu0 0.0
          %1809 = vmatpush1.msra.mxu0 0.0
          %1810 = vmatprep.subr.mxu0 0.0
          %1811 = vmatpush1.msra.mxu0 0.0
          %1812 = vmatprep.subr.mxu0 0.0
          %1813 = vmatpush1.msra.mxu0 0.0
          %1814 = vmatprep.subr.mxu0 0.0
          %1815 = vmatpush1.msra.mxu0 0.0
          %1816 = vmatprep.subr.mxu0 0.0
          %1817 = vmatpush1.msra.mxu0 0.0
          %1818 = vmatprep.subr.mxu0 0.0
          %1819 = vmatpush1.msra.mxu0 0.0
          %1820 = vmatprep.subr.mxu0 0.0
          %1821 = vmatpush1.msra.mxu0 0.0
          %1822 = vmatprep.subr.mxu0 0.0
          %1823 = vmatpush1.msra.mxu0 0.0
          %1824 = vmatprep.subr.mxu0 0.0
          %1825 = vmatpush1.msra.mxu0 0.0
          %1826 = vmatprep.subr.mxu0 0.0
          %1827 = vmatpush1.msra.mxu0 0.0
          %1828 = vmatprep.subr.mxu0 0.0
          %1829 = vmatpush1.msra.mxu0 0.0
          %1830 = vmatprep.subr.mxu0 0.0
          %1831 = vmatpush1.msra.mxu0 0.0
          %1832 = vmatprep.subr.mxu0 0.0
          %1833 = vmatpush1.msra.mxu0 0.0
          %1834 = vmatprep.subr.mxu0 0.0
          %1835 = vmatpush1.msra.mxu0 0.0
          %1836 = vmatprep.subr.mxu0 0.0
          %1837 = vmatpush1.msra.mxu0 0.0
          %1838 = vmatprep.subr.mxu0 0.0
          %1839 = vmatpush1.msra.mxu0 0.0
          %1840 = vmatprep.subr.mxu0 0.0
          %1841 = vmatpush1.msra.mxu0 0.0
          %1842 = vmatprep.subr.mxu0 0.0
          %1843 = vmatpush1.msra.mxu0 0.0
          %1844 = vmatprep.subr.mxu0 0.0
          %1845 = vmatpush1.msra.mxu0 0.0
          %1846 = vmatprep.subr.mxu0 0.0
          %1847 = vmatpush1.msra.mxu0 0.0
          %1848 = vmatprep.mubr.f32.mxu0 0.0
          %1849 = vmatmul.mubr.f32.gmra.mrb[0].mxu0 %v1782
          %v1850 = vpop.f32.mrb[0].mxu0
          %v1851 = vadd.f32 0.0, %v1850
          %v1852 = vpop.f32.mrb[0].mxu0
          %1853 = vdwg.mxu0
          %v1854 = vsel %vm848, %v1752, 0
          %1856 = vmatprep.subr.mxu0 0.0
          %1857 = vmatpush1.msra.mxu0 %v1774
          %1858 = vmatprep.subr.mxu0 0.0
          %1859 = vmatpush1.msra.mxu0 %v1775
          %1860 = vmatprep.subr.mxu0 0.0
          %1861 = vmatpush1.msra.mxu0 %v1776
          %1862 = vmatprep.subr.mxu0 0.0
          %1863 = vmatpush1.msra.mxu0 %v1777
          %1864 = vmatprep.subr.mxu0 0.0
          %1865 = vmatpush1.msra.mxu0 0.0
          %1866 = vmatprep.subr.mxu0 0.0
          %1867 = vmatpush1.msra.mxu0 0.0
          %1868 = vmatprep.subr.mxu0 0.0
          %1869 = vmatpush1.msra.mxu0 0.0
          %1870 = vmatprep.subr.mxu0 0.0
          %1871 = vmatpush1.msra.mxu0 0.0
          %1872 = vmatprep.subr.mxu0 0.0
          %1873 = vmatpush1.msra.mxu0 0.0
          %1874 = vmatprep.subr.mxu0 0.0
          %1875 = vmatpush1.msra.mxu0 0.0
          %1876 = vmatprep.subr.mxu0 0.0
          %1877 = vmatpush1.msra.mxu0 0.0
          %1878 = vmatprep.subr.mxu0 0.0
          %1879 = vmatpush1.msra.mxu0 0.0
          %1880 = vmatprep.subr.mxu0 0.0
          %1881 = vmatpush1.msra.mxu0 0.0
          %1882 = vmatprep.subr.mxu0 0.0
          %1883 = vmatpush1.msra.mxu0 0.0
          %1884 = vmatprep.subr.mxu0 0.0
          %1885 = vmatpush1.msra.mxu0 0.0
          %1886 = vmatprep.subr.mxu0 0.0
          %1887 = vmatpush1.msra.mxu0 0.0
          %1888 = vmatprep.subr.mxu0 0.0
          %1889 = vmatpush1.msra.mxu0 0.0
          %1890 = vmatprep.subr.mxu0 0.0
          %1891 = vmatpush1.msra.mxu0 0.0
          %1892 = vmatprep.subr.mxu0 0.0
          %1893 = vmatpush1.msra.mxu0 0.0
          %1894 = vmatprep.subr.mxu0 0.0
          %1895 = vmatpush1.msra.mxu0 0.0
          %1896 = vmatprep.subr.mxu0 0.0
          %1897 = vmatpush1.msra.mxu0 0.0
          %1898 = vmatprep.subr.mxu0 0.0
          %1899 = vmatpush1.msra.mxu0 0.0
          %1900 = vmatprep.subr.mxu0 0.0
          %1901 = vmatpush1.msra.mxu0 0.0
          %1902 = vmatprep.subr.mxu0 0.0
          %1903 = vmatpush1.msra.mxu0 0.0
          %1904 = vmatprep.subr.mxu0 0.0
          %1905 = vmatpush1.msra.mxu0 0.0
          %1906 = vmatprep.subr.mxu0 0.0
          %1907 = vmatpush1.msra.mxu0 0.0
          %1908 = vmatprep.subr.mxu0 0.0
          %1909 = vmatpush1.msra.mxu0 0.0
          %1910 = vmatprep.subr.mxu0 0.0
          %1911 = vmatpush1.msra.mxu0 0.0
          %1912 = vmatprep.subr.mxu0 0.0
          %1913 = vmatpush1.msra.mxu0 0.0
          %1914 = vmatprep.subr.mxu0 0.0
          %1915 = vmatpush1.msra.mxu0 0.0
          %1916 = vmatprep.subr.mxu0 0.0
          %1917 = vmatpush1.msra.mxu0 0.0
          %1918 = vmatprep.subr.mxu0 0.0
          %1919 = vmatpush1.msra.mxu0 0.0
          %1920 = vmatprep.mubr.f32.mxu0 0.0
          %1921 = vmatmul.mubr.f32.gmra.mrb[0].mxu0 %v1854
          %v1922 = vpop.f32.mrb[0].mxu0
          %v1923 = vadd.f32 %v1851, %v1922
          %v1924 = vpop.f32.mrb[0].mxu0
          %1925 = vdwg.mxu0
          %v1926 = vld [vmem:[#allocation25] sm:$0x1]
          %v1928 = vlaneseq
          %v1929 = vshrl.u32 %v1928, 7
          %v1930 = vsub.s32 0, %v1929
          %v1931 = vrot.slane %v1926, %v1930
          %v1933 = vadd.f32 %v1923, %v1931
          %1934 = vst [vmem:[#allocation26] sm:$0xff] %v1933
        $region116: #{tpu_custom_call.1} parent=63 // pred_fallthru
          _
        // Predicated region
        $region117: #{tpu_custom_call.1} parent=63 // pred_check
          %p1935 = pneg %p315
        $region118: #{tpu_custom_call.1} parent=63 // pred_check_branch
          %1937 = sbr.rel (%p1935) target = $region120
        $region119: #{tpu_custom_call.1} parent=63 // pred_region
          %s1939 = ssub.s32 128, 128
          %1940 = vsyncadd [#allocation10], %s1939
          %s1941 = smul.addr %s37, 128
          %s1942 = scalar_lea.hbm %s11, %s1941
          %s1944 = sshll.u32 [#allocation26], 4
          %s1945 = int_to_ptr.vmem [resolvable:$true] %s1944
          %1947 = dma.vmem_to_hbm [thread:$0]  %s1945, 128, %s1942, [#allocation10]
        $region120: #{tpu_custom_call.1} parent=63 // pred_fallthru
          _
        // Predicated region
        $region121: #{tpu_custom_call.1} parent=63 // pred_check
          %p1948 = pneg %p315
        $region122: #{tpu_custom_call.1} parent=63 // pred_check_branch
          %1950 = sbr.rel (%p1948) target = $region124
        $region123: #{tpu_custom_call.1} parent=63 // pred_region
          %1951 = dma.done [#allocation10], 128
        $region124: #{tpu_custom_call.1} parent=63 // pred_fallthru
          _
      $region64: #{tpu_custom_call.1} parent=5 // pred_fallthru
        _
      %p1952 = scmp.le.s32.totalorder 2, %s28
      // Predicated region
      $region125: #{tpu_custom_call.1} parent=5 // pred_check
        %p1953 = pneg %p1952
      $region126: #{tpu_custom_call.1} parent=5 // pred_check_branch
        %1955 = sbr.rel (%p1953) target = $region128
      $region127: #{tpu_custom_call.1} parent=5 // pred_region
        %s1956 = ssub.s32 %s28, 2
      $region128: #{tpu_custom_call.1} parent=5 // pred_fallthru
        _
    $region6: #{tpu_custom_call.1} parent=1 // loop_footer
      %s32 = sadd.s32 1, %s28
    $region7: #{tpu_custom_call.1} parent=1 // loop_footer_branch
      %27 = sbr.rel target = $region3
    $region8: #{tpu_custom_call.1} parent=1 // loop_exit
      _
    %1957 = vsyncpa [#allocation9], 1
    %s1958 = scalar_lea.sflag [#allocation9], 1
    %1959 = vsyncpa %s1958, 1
    %1960 = vsyncpa [#allocation12], 1
    %s1961 = scalar_lea.sflag [#allocation12], 1
    %1962 = vsyncpa %s1961, 1
    %1963 = vsyncpa [#allocation15], 1
    %1964 = vsyncpa [#allocation18], 1
    %1965 = vsyncpa [#allocation21], 1
    %1966 = vsyncpa [#allocation24], 1
    %1967 = vsyncpa [#allocation10], 1
    %s1968 = scalar_lea.sflag [#allocation10], 1
    %1969 = vsyncpa %s1968, 1

</llo_original>
